<compile_context>
chip_gen: v5e
topology: v5e:2x2
jax: 0.10.0
libtpu: 0.0.40
codegen_flags: <defaults>
</compile_context>

<pallas_src>
import functools

import jax
import jax.numpy as jnp
from jax.experimental import pallas as pl
from jax.experimental.pallas import tpu as pltpu

EPS = 1e-5
INPUT_SIZE = 24
NUM_CHANNELS = 64
OUTPUT_SIZE = 6
KERNEL_SIZE = 3          # padding = (k-1)//2 = 1 -> "same" length
WINDOW = 8               # tail window (>= 6-step receptive field of y[:, :, -1])
BATCH_ALIGN = 16         # bf16 sublane tile -> keep per-time-step slabs aligned


# ---------------------------------------------------------------------------
# Kernel
# ---------------------------------------------------------------------------
def tcn_kernel(pad_rows, tb,
               x_ref,
               w1, s1, t1, w2, s2, t2, w3, s3, t3, w4, s4, t4,
               w5, b5, o_ref):
    # x_ref block: (WINDOW*tb, INPUT_SIZE) bf16, time-major (row = t*tb + j).
    # Hoisted zero slabs, reused by every layer (JAX does not CSE broadcasts).
    zero_in = jnp.zeros((tb, INPUT_SIZE), jnp.bfloat16)
    zero_mid = jnp.zeros((tb, NUM_CHANNELS), jnp.bfloat16)
    zero_pad = (jnp.zeros((pad_rows * tb, NUM_CHANNELS), jnp.bfloat16)
                if pad_rows > 0 else None)

    def conv_bn_relu(h, zero, w_ref, s_ref, t_ref):
        # Time shifts = static, tile-aligned sublane slices offset by tb rows.
        prev = jnp.concatenate([zero, h[:-tb, :]], axis=0)
        nxt = jnp.concatenate([h[tb:, :], zero], axis=0)
        h_cat = jnp.concatenate([prev, h, nxt], axis=-1)        # (rows, 3*Cin) bf16
        y = jnp.dot(h_cat, w_ref[...], preferred_element_type=jnp.float32)
        # conv bias is pre-folded into the BN shift on the host; BN+ReLU in f32.
        y = jnp.maximum(y * s_ref[...] + t_ref[...], 0.0)
        y = y.astype(jnp.bfloat16)
        if pad_rows > 0:
            # L < WINDOW: synthetic left-pad time steps must stay zero so they
            # behave like the conv's zero padding for the next layer.
            y = jnp.concatenate([zero_pad, y[pad_rows * tb:, :]], axis=0)
        return y

    h = conv_bn_relu(x_ref[...], zero_in, w1, s1, t1)
    h = conv_bn_relu(h, zero_mid, w2, s2, t2)
    h = conv_bn_relu(h, zero_mid, w3, s3, t3)
    h = conv_bn_relu(h, zero_mid, w4, s4, t4)

    # Layer 5: only the last time step is returned downstream; its right tap is
    # the conv's zero padding, so the two taps (w5[0], w5[1]) suffice.
    h_prev = h[(WINDOW - 2) * tb:(WINDOW - 1) * tb, :]
    h_cur = h[(WINDOW - 1) * tb:, :]
    h_cat5 = jnp.concatenate([h_prev, h_cur], axis=-1)          # (tb, 2*C) bf16
    y = jnp.dot(h_cat5, w5[...], preferred_element_type=jnp.float32) + b5[...]
    o_ref[...] = y.astype(o_ref.dtype)                          # (tb, OUTPUT_SIZE)


# ---------------------------------------------------------------------------
# Host-side parameter packing (fold BN + conv bias, flatten taps, bf16 weights)
# ---------------------------------------------------------------------------
def pack_params(layers):
    packed = []
    for li, p in enumerate(layers):
        w = p["w"]                                               # (3, Cin, Cout)
        if li < 4:
            wflat = w.reshape(-1, w.shape[-1]).astype(jnp.bfloat16)   # (3*Cin, Cout)
            scale = p["gamma"] / jnp.sqrt(p["var"] + EPS)
            shift = (p["b"] - p["mean"]) * scale + p["beta"]
            packed += [wflat, scale.reshape(1, -1), shift.reshape(1, -1)]
        else:
            # Only the taps feeding the last time step are needed.
            w5cat = jnp.concatenate([w[0], w[1]], axis=0).astype(jnp.bfloat16)  # (2C, Cout)
            packed += [w5cat, p["b"].reshape(1, -1)]
    return packed


# ---------------------------------------------------------------------------
# Wrapper
# ---------------------------------------------------------------------------
def _round_up(x, m):
    return -(-x // m) * m


def _num_tensorcores():
    try:
        kind = jax.devices()[0].device_kind.lower()
        return 2 if ("v7" in kind or "7x" in kind) else 1
    except Exception:
        return 1


def tcn_forward(x_ncl, layers, *, batch_tile=256):
    """x_ncl: (N, C_in, L) float32 (PyTorch layout).  Returns (N, OUTPUT_SIZE)."""
    n, cin, length = x_ncl.shape
    assert cin == INPUT_SIZE

    packed = pack_params(layers)

    # Tail window: only the last min(L, WINDOW) steps influence y[:, :, -1].
    x_nlc = jnp.transpose(x_ncl, (0, 2, 1))                     # (N, L, Cin)
    pad_rows = max(0, WINDOW - length)
    if pad_rows:
        x_win = jnp.pad(x_nlc, ((0, 0), (pad_rows, 0), (0, 0)))
    else:
        x_win = x_nlc[:, length - WINDOW:, :]

    # Batch tile: multiple of 16; large tiles amortize per-step overhead and
    # fill the MXU.  On a 2-TensorCore part keep >= 2 grid blocks when possible.
    n_al = _round_up(n, BATCH_ALIGN)
    tb = max(BATCH_ALIGN, (min(batch_tile, n_al) // BATCH_ALIGN) * BATCH_ALIGN)
    if _num_tensorcores() >= 2 and n_al >= 2 * BATCH_ALIGN:
        tb = min(tb, _round_up(n_al // 2, BATCH_ALIGN))
    num_blocks = pl.cdiv(n_al, tb)
    n_pad = num_blocks * tb
    if n_pad != n:
        x_win = jnp.pad(x_win, ((0, n_pad - n), (0, 0), (0, 0)))

    # Time-major per block: row = t*tb + batch_in_block, so in-kernel time
    # shifts are static, tile-aligned sublane slices.
    x_tm = jnp.transpose(x_win.reshape(num_blocks, tb, WINDOW, INPUT_SIZE),
                         (0, 2, 1, 3))
    x_tm = x_tm.reshape(num_blocks * WINDOW * tb, INPUT_SIZE).astype(jnp.bfloat16)

    param_specs = [pl.BlockSpec(p.shape, lambda i: (0, 0)) for p in packed]

    y = pl.pallas_call(
        functools.partial(tcn_kernel, pad_rows, tb),
        out_shape=jax.ShapeDtypeStruct((num_blocks * tb, OUTPUT_SIZE), jnp.float32),
        grid=(num_blocks,),
        in_specs=[pl.BlockSpec((WINDOW * tb, INPUT_SIZE), lambda i: (i, 0))]
                 + param_specs,
        out_specs=pl.BlockSpec((tb, OUTPUT_SIZE), lambda i: (i, 0)),
        compiler_params=pltpu.CompilerParams(
            dimension_semantics=("parallel",)),
    )(x_tm, *packed)

    return y[:n]


# ---------------------------------------------------------------------------
# Deterministic synthetic parameters (mirrors the nn.Module shapes)
# ---------------------------------------------------------------------------
def make_params(key):
    dims = [(INPUT_SIZE, NUM_CHANNELS)] + [(NUM_CHANNELS, NUM_CHANNELS)] * 3 \
           + [(NUM_CHANNELS, OUTPUT_SIZE)]
    layers = []
    for li, (cin, cout) in enumerate(dims):
        key, kw, kb, kg, kbt, km, kv = jax.random.split(key, 7)
        layer = {
            "w": 0.05 * jax.random.normal(kw, (KERNEL_SIZE, cin, cout), jnp.float32),
            "b": 0.05 * jax.random.normal(kb, (cout,), jnp.float32),
        }
        if li < 4:   # BatchNorm1d after the first four convs
            layer["gamma"] = 1.0 + 0.1 * jax.random.normal(kg, (cout,), jnp.float32)
            layer["beta"] = 0.1 * jax.random.normal(kbt, (cout,), jnp.float32)
            layer["mean"] = 0.1 * jax.random.normal(km, (cout,), jnp.float32)
            layer["var"] = jnp.abs(jax.random.normal(kv, (cout,), jnp.float32)) + 0.5
        layers.append(layer)
    return layers


# ---------------------------------------------------------------------------
# Pure-JAX f32 reference (full-length conv, unfolded BN) for a sanity check
# ---------------------------------------------------------------------------
def ref_forward(x_ncl, layers):
    h = jnp.transpose(x_ncl, (0, 2, 1))                         # (N, L, Cin)

    def conv(h, w, b):
        zero = jnp.zeros_like(h[:, :1, :])
        hp = jnp.concatenate([zero, h[:, :-1, :]], axis=1)
        hn = jnp.concatenate([h[:, 1:, :], zero], axis=1)
        return (jnp.einsum("nlc,co->nlo", hp, w[0])
                + jnp.einsum("nlc,co->nlo", h, w[1])
                + jnp.einsum("nlc,co->nlo", hn, w[2]) + b)

    for li, p in enumerate(layers):
        h = conv(h, p["w"], p["b"])
        if li < 4:
            h = (h - p["mean"]) / jnp.sqrt(p["var"] + EPS) * p["gamma"] + p["beta"]
            h = jnp.maximum(h, 0.0)
    return h[:, -1, :]


# ---------------------------------------------------------------------------
if __name__ == "__main__":
    key = jax.random.PRNGKey(0)
    k_x, k_p = jax.random.split(key)

    N, L = 2, 16
    x = jax.random.normal(k_x, (N, INPUT_SIZE, L), jnp.float32)   # (N, C, L)
    layers = make_params(k_p)

    out = jax.block_until_ready(tcn_forward(x, layers))
    ref = ref_forward(x, layers)

    assert out.shape == (N, OUTPUT_SIZE)
    # bf16 matmul operands (f32 accumulation) -> slightly loosened tolerance.
    assert jnp.allclose(out, ref, atol=2e-2, rtol=2e-2), (out, ref)

    print("KERNEL_OK")
</pallas_src>

<mosaic_0001>
module attributes {stable_mosaic.version = 11 : i64} {
  func.func @tcn_kernel(%arg0: i32, %arg1: memref<128x24xbf16, #tpu.memory_space<vmem>>, %arg2: memref<72x64xbf16, #tpu.memory_space<vmem>>, %arg3: memref<1x64xf32, #tpu.memory_space<vmem>>, %arg4: memref<1x64xf32, #tpu.memory_space<vmem>>, %arg5: memref<192x64xbf16, #tpu.memory_space<vmem>>, %arg6: memref<1x64xf32, #tpu.memory_space<vmem>>, %arg7: memref<1x64xf32, #tpu.memory_space<vmem>>, %arg8: memref<192x64xbf16, #tpu.memory_space<vmem>>, %arg9: memref<1x64xf32, #tpu.memory_space<vmem>>, %arg10: memref<1x64xf32, #tpu.memory_space<vmem>>, %arg11: memref<192x64xbf16, #tpu.memory_space<vmem>>, %arg12: memref<1x64xf32, #tpu.memory_space<vmem>>, %arg13: memref<1x64xf32, #tpu.memory_space<vmem>>, %arg14: memref<128x6xbf16, #tpu.memory_space<vmem>>, %arg15: memref<1x6xf32, #tpu.memory_space<vmem>>, %arg16: memref<16x6xf32, #tpu.memory_space<vmem>>) attributes {dimension_semantics = [#tpu.dimension_semantics<parallel>], iteration_bounds = array<i64: 1>, scalar_prefetch = 0 : i64, scratch_operands = 0 : i64, tpu.core_type = #tpu.core_type<tc>, window_params = [{transform_indices = @transform_0, window_bounds = array<i64: 128, 24>}, {pipeline_mode = #tpu.pipeline_mode<synchronous>, transform_indices = @transform_1, window_bounds = array<i64: 72, 64>}, {pipeline_mode = #tpu.pipeline_mode<synchronous>, transform_indices = @transform_2, window_bounds = array<i64: 1, 64>}, {pipeline_mode = #tpu.pipeline_mode<synchronous>, transform_indices = @transform_3, window_bounds = array<i64: 1, 64>}, {pipeline_mode = #tpu.pipeline_mode<synchronous>, transform_indices = @transform_4, window_bounds = array<i64: 192, 64>}, {pipeline_mode = #tpu.pipeline_mode<synchronous>, transform_indices = @transform_5, window_bounds = array<i64: 1, 64>}, {pipeline_mode = #tpu.pipeline_mode<synchronous>, transform_indices = @transform_6, window_bounds = array<i64: 1, 64>}, {pipeline_mode = #tpu.pipeline_mode<synchronous>, transform_indices = @transform_7, window_bounds = array<i64: 192, 64>}, {pipeline_mode = #tpu.pipeline_mode<synchronous>, transform_indices = @transform_8, window_bounds = array<i64: 1, 64>}, {pipeline_mode = #tpu.pipeline_mode<synchronous>, transform_indices = @transform_9, window_bounds = array<i64: 1, 64>}, {pipeline_mode = #tpu.pipeline_mode<synchronous>, transform_indices = @transform_10, window_bounds = array<i64: 192, 64>}, {pipeline_mode = #tpu.pipeline_mode<synchronous>, transform_indices = @transform_11, window_bounds = array<i64: 1, 64>}, {pipeline_mode = #tpu.pipeline_mode<synchronous>, transform_indices = @transform_12, window_bounds = array<i64: 1, 64>}, {pipeline_mode = #tpu.pipeline_mode<synchronous>, transform_indices = @transform_13, window_bounds = array<i64: 128, 6>}, {pipeline_mode = #tpu.pipeline_mode<synchronous>, transform_indices = @transform_14, window_bounds = array<i64: 1, 6>}, {transform_indices = @transform_15, window_bounds = array<i64: 16, 6>}]} {
    %cst = arith.constant 0.000000e+00 : bf16
    %0 = vector.broadcast %cst : bf16 to vector<16x24xbf16>
    %cst_0 = arith.constant 0.000000e+00 : bf16
    %1 = vector.broadcast %cst_0 : bf16 to vector<16x64xbf16>
    %c0 = arith.constant 0 : index
    %c0_1 = arith.constant 0 : index
    %2 = vector.load %arg1[%c0, %c0_1] : memref<128x24xbf16, #tpu.memory_space<vmem>>, vector<128x24xbf16>
    %3 = vector.extract_strided_slice %2 {offsets = [0, 0], sizes = [112, 24], strides = [1, 1]} : vector<128x24xbf16> to vector<112x24xbf16>
    %4 = tpu.concatenate %0, %3 in 0 : vector<16x24xbf16>, vector<112x24xbf16> -> vector<128x24xbf16>
    %5 = vector.extract_strided_slice %2 {offsets = [16, 0], sizes = [112, 24], strides = [1, 1]} : vector<128x24xbf16> to vector<112x24xbf16>
    %6 = tpu.concatenate %5, %0 in 0 : vector<112x24xbf16>, vector<16x24xbf16> -> vector<128x24xbf16>
    %7 = tpu.concatenate %4, %2, %6 in 1 : vector<128x24xbf16>, vector<128x24xbf16>, vector<128x24xbf16> -> vector<128x72xbf16>
    %c0_2 = arith.constant 0 : index
    %c0_3 = arith.constant 0 : index
    %8 = vector.load %arg2[%c0_2, %c0_3] : memref<72x64xbf16, #tpu.memory_space<vmem>>, vector<72x64xbf16>
    %cst_4 = arith.constant dense<0.000000e+00> : vector<128x64xf32>
    %9 = tpu.matmul %7, %8, %cst_4 {dimension_numbers = #tpu.dot_dimension_numbers<[1], [0], [0], [1], [0, 0, 1, 1], [], []>} : vector<128x72xbf16>, vector<72x64xbf16>, vector<128x64xf32> -> vector<128x64xf32>
    %c0_5 = arith.constant 0 : index
    %c0_6 = arith.constant 0 : index
    %10 = vector.load %arg3[%c0_5, %c0_6] : memref<1x64xf32, #tpu.memory_space<vmem>>, vector<1x64xf32>
    %11 = vector.broadcast %10 : vector<1x64xf32> to vector<128x64xf32>
    %12 = arith.mulf %9, %11 : vector<128x64xf32>
    %c0_7 = arith.constant 0 : index
    %c0_8 = arith.constant 0 : index
    %13 = vector.load %arg4[%c0_7, %c0_8] : memref<1x64xf32, #tpu.memory_space<vmem>>, vector<1x64xf32>
    %14 = vector.broadcast %13 : vector<1x64xf32> to vector<128x64xf32>
    %15 = arith.addf %12, %14 : vector<128x64xf32>
    %cst_9 = arith.constant 0.000000e+00 : f32
    %16 = vector.broadcast %cst_9 : f32 to vector<128x64xf32>
    %17 = arith.maximumf %15, %16 : vector<128x64xf32>
    %18 = arith.truncf %17 : vector<128x64xf32> to vector<128x64xbf16>
    %19 = vector.extract_strided_slice %18 {offsets = [0, 0], sizes = [112, 64], strides = [1, 1]} : vector<128x64xbf16> to vector<112x64xbf16>
    %20 = tpu.concatenate %1, %19 in 0 : vector<16x64xbf16>, vector<112x64xbf16> -> vector<128x64xbf16>
    %21 = vector.extract_strided_slice %18 {offsets = [16, 0], sizes = [112, 64], strides = [1, 1]} : vector<128x64xbf16> to vector<112x64xbf16>
    %22 = tpu.concatenate %21, %1 in 0 : vector<112x64xbf16>, vector<16x64xbf16> -> vector<128x64xbf16>
    %23 = tpu.concatenate %20, %18, %22 in 1 : vector<128x64xbf16>, vector<128x64xbf16>, vector<128x64xbf16> -> vector<128x192xbf16>
    %c0_10 = arith.constant 0 : index
    %c0_11 = arith.constant 0 : index
    %24 = vector.load %arg5[%c0_10, %c0_11] : memref<192x64xbf16, #tpu.memory_space<vmem>>, vector<192x64xbf16>
    %cst_12 = arith.constant dense<0.000000e+00> : vector<128x64xf32>
    %25 = tpu.matmul %23, %24, %cst_12 {dimension_numbers = #tpu.dot_dimension_numbers<[1], [0], [0], [1], [0, 0, 1, 1], [], []>} : vector<128x192xbf16>, vector<192x64xbf16>, vector<128x64xf32> -> vector<128x64xf32>
    %c0_13 = arith.constant 0 : index
    %c0_14 = arith.constant 0 : index
    %26 = vector.load %arg6[%c0_13, %c0_14] : memref<1x64xf32, #tpu.memory_space<vmem>>, vector<1x64xf32>
    %27 = vector.broadcast %26 : vector<1x64xf32> to vector<128x64xf32>
    %28 = arith.mulf %25, %27 : vector<128x64xf32>
    %c0_15 = arith.constant 0 : index
    %c0_16 = arith.constant 0 : index
    %29 = vector.load %arg7[%c0_15, %c0_16] : memref<1x64xf32, #tpu.memory_space<vmem>>, vector<1x64xf32>
    %30 = vector.broadcast %29 : vector<1x64xf32> to vector<128x64xf32>
    %31 = arith.addf %28, %30 : vector<128x64xf32>
    %cst_17 = arith.constant 0.000000e+00 : f32
    %32 = vector.broadcast %cst_17 : f32 to vector<128x64xf32>
    %33 = arith.maximumf %31, %32 : vector<128x64xf32>
    %34 = arith.truncf %33 : vector<128x64xf32> to vector<128x64xbf16>
    %35 = vector.extract_strided_slice %34 {offsets = [0, 0], sizes = [112, 64], strides = [1, 1]} : vector<128x64xbf16> to vector<112x64xbf16>
    %36 = tpu.concatenate %1, %35 in 0 : vector<16x64xbf16>, vector<112x64xbf16> -> vector<128x64xbf16>
    %37 = vector.extract_strided_slice %34 {offsets = [16, 0], sizes = [112, 64], strides = [1, 1]} : vector<128x64xbf16> to vector<112x64xbf16>
    %38 = tpu.concatenate %37, %1 in 0 : vector<112x64xbf16>, vector<16x64xbf16> -> vector<128x64xbf16>
    %39 = tpu.concatenate %36, %34, %38 in 1 : vector<128x64xbf16>, vector<128x64xbf16>, vector<128x64xbf16> -> vector<128x192xbf16>
    %c0_18 = arith.constant 0 : index
    %c0_19 = arith.constant 0 : index
    %40 = vector.load %arg8[%c0_18, %c0_19] : memref<192x64xbf16, #tpu.memory_space<vmem>>, vector<192x64xbf16>
    %cst_20 = arith.constant dense<0.000000e+00> : vector<128x64xf32>
    %41 = tpu.matmul %39, %40, %cst_20 {dimension_numbers = #tpu.dot_dimension_numbers<[1], [0], [0], [1], [0, 0, 1, 1], [], []>} : vector<128x192xbf16>, vector<192x64xbf16>, vector<128x64xf32> -> vector<128x64xf32>
    %c0_21 = arith.constant 0 : index
    %c0_22 = arith.constant 0 : index
    %42 = vector.load %arg9[%c0_21, %c0_22] : memref<1x64xf32, #tpu.memory_space<vmem>>, vector<1x64xf32>
    %43 = vector.broadcast %42 : vector<1x64xf32> to vector<128x64xf32>
    %44 = arith.mulf %41, %43 : vector<128x64xf32>
    %c0_23 = arith.constant 0 : index
    %c0_24 = arith.constant 0 : index
    %45 = vector.load %arg10[%c0_23, %c0_24] : memref<1x64xf32, #tpu.memory_space<vmem>>, vector<1x64xf32>
    %46 = vector.broadcast %45 : vector<1x64xf32> to vector<128x64xf32>
    %47 = arith.addf %44, %46 : vector<128x64xf32>
    %cst_25 = arith.constant 0.000000e+00 : f32
    %48 = vector.broadcast %cst_25 : f32 to vector<128x64xf32>
    %49 = arith.maximumf %47, %48 : vector<128x64xf32>
    %50 = arith.truncf %49 : vector<128x64xf32> to vector<128x64xbf16>
    %51 = vector.extract_strided_slice %50 {offsets = [0, 0], sizes = [112, 64], strides = [1, 1]} : vector<128x64xbf16> to vector<112x64xbf16>
    %52 = tpu.concatenate %1, %51 in 0 : vector<16x64xbf16>, vector<112x64xbf16> -> vector<128x64xbf16>
    %53 = vector.extract_strided_slice %50 {offsets = [16, 0], sizes = [112, 64], strides = [1, 1]} : vector<128x64xbf16> to vector<112x64xbf16>
    %54 = tpu.concatenate %53, %1 in 0 : vector<112x64xbf16>, vector<16x64xbf16> -> vector<128x64xbf16>
    %55 = tpu.concatenate %52, %50, %54 in 1 : vector<128x64xbf16>, vector<128x64xbf16>, vector<128x64xbf16> -> vector<128x192xbf16>
    %c0_26 = arith.constant 0 : index
    %c0_27 = arith.constant 0 : index
    %56 = vector.load %arg11[%c0_26, %c0_27] : memref<192x64xbf16, #tpu.memory_space<vmem>>, vector<192x64xbf16>
    %cst_28 = arith.constant dense<0.000000e+00> : vector<128x64xf32>
    %57 = tpu.matmul %55, %56, %cst_28 {dimension_numbers = #tpu.dot_dimension_numbers<[1], [0], [0], [1], [0, 0, 1, 1], [], []>} : vector<128x192xbf16>, vector<192x64xbf16>, vector<128x64xf32> -> vector<128x64xf32>
    %c0_29 = arith.constant 0 : index
    %c0_30 = arith.constant 0 : index
    %58 = vector.load %arg12[%c0_29, %c0_30] : memref<1x64xf32, #tpu.memory_space<vmem>>, vector<1x64xf32>
    %59 = vector.broadcast %58 : vector<1x64xf32> to vector<128x64xf32>
    %60 = arith.mulf %57, %59 : vector<128x64xf32>
    %c0_31 = arith.constant 0 : index
    %c0_32 = arith.constant 0 : index
    %61 = vector.load %arg13[%c0_31, %c0_32] : memref<1x64xf32, #tpu.memory_space<vmem>>, vector<1x64xf32>
    %62 = vector.broadcast %61 : vector<1x64xf32> to vector<128x64xf32>
    %63 = arith.addf %60, %62 : vector<128x64xf32>
    %cst_33 = arith.constant 0.000000e+00 : f32
    %64 = vector.broadcast %cst_33 : f32 to vector<128x64xf32>
    %65 = arith.maximumf %63, %64 : vector<128x64xf32>
    %66 = arith.truncf %65 : vector<128x64xf32> to vector<128x64xbf16>
    %67 = vector.extract_strided_slice %66 {offsets = [96, 0], sizes = [16, 64], strides = [1, 1]} : vector<128x64xbf16> to vector<16x64xbf16>
    %68 = vector.extract_strided_slice %66 {offsets = [112, 0], sizes = [16, 64], strides = [1, 1]} : vector<128x64xbf16> to vector<16x64xbf16>
    %69 = tpu.concatenate %67, %68 in 1 : vector<16x64xbf16>, vector<16x64xbf16> -> vector<16x128xbf16>
    %c0_34 = arith.constant 0 : index
    %c0_35 = arith.constant 0 : index
    %70 = vector.load %arg14[%c0_34, %c0_35] : memref<128x6xbf16, #tpu.memory_space<vmem>>, vector<128x6xbf16>
    %cst_36 = arith.constant dense<0.000000e+00> : vector<16x6xf32>
    %71 = tpu.matmul %69, %70, %cst_36 {dimension_numbers = #tpu.dot_dimension_numbers<[1], [0], [0], [1], [0, 0, 1, 1], [], []>} : vector<16x128xbf16>, vector<128x6xbf16>, vector<16x6xf32> -> vector<16x6xf32>
    %c0_37 = arith.constant 0 : index
    %c0_38 = arith.constant 0 : index
    %72 = vector.load %arg15[%c0_37, %c0_38] : memref<1x6xf32, #tpu.memory_space<vmem>>, vector<1x6xf32>
    %73 = vector.broadcast %72 : vector<1x6xf32> to vector<16x6xf32>
    %74 = arith.addf %71, %73 : vector<16x6xf32>
    %c0_39 = arith.constant 0 : index
    %c0_40 = arith.constant 0 : index
    %75 = vector.load %arg16[%c0_39, %c0_40] : memref<16x6xf32, #tpu.memory_space<vmem>>, vector<16x6xf32>
    tpu.vector_store %arg16[%c0_39, %c0_40], %74 {strides = array<i32>} : memref<16x6xf32, #tpu.memory_space<vmem>>, vector<16x6xf32>,
    return
  }
  func.func @transform_0(%arg0: i32) -> (i32, i32) {
    %c0_i32 = arith.constant 0 : i32
    %c0_i32_0 = arith.constant 0 : i32
    return %arg0, %c0_i32 : i32, i32
  }
  func.func @transform_1(%arg0: i32) -> (i32, i32) {
    %c0_i32 = arith.constant 0 : i32
    %c0_i32_0 = arith.constant 0 : i32
    %c0_i32_1 = arith.constant 0 : i32
    return %c0_i32, %c0_i32_0 : i32, i32
  }
  func.func @transform_2(%arg0: i32) -> (i32, i32) {
    %c0_i32 = arith.constant 0 : i32
    %c0_i32_0 = arith.constant 0 : i32
    %c0_i32_1 = arith.constant 0 : i32
    return %c0_i32, %c0_i32_0 : i32, i32
  }
  func.func @transform_3(%arg0: i32) -> (i32, i32) {
    %c0_i32 = arith.constant 0 : i32
    %c0_i32_0 = arith.constant 0 : i32
    %c0_i32_1 = arith.constant 0 : i32
    return %c0_i32, %c0_i32_0 : i32, i32
  }
  func.func @transform_4(%arg0: i32) -> (i32, i32) {
    %c0_i32 = arith.constant 0 : i32
    %c0_i32_0 = arith.constant 0 : i32
    %c0_i32_1 = arith.constant 0 : i32
    return %c0_i32, %c0_i32_0 : i32, i32
  }
  func.func @transform_5(%arg0: i32) -> (i32, i32) {
    %c0_i32 = arith.constant 0 : i32
    %c0_i32_0 = arith.constant 0 : i32
    %c0_i32_1 = arith.constant 0 : i32
    return %c0_i32, %c0_i32_0 : i32, i32
  }
  func.func @transform_6(%arg0: i32) -> (i32, i32) {
    %c0_i32 = arith.constant 0 : i32
    %c0_i32_0 = arith.constant 0 : i32
    %c0_i32_1 = arith.constant 0 : i32
    return %c0_i32, %c0_i32_0 : i32, i32
  }
  func.func @transform_7(%arg0: i32) -> (i32, i32) {
    %c0_i32 = arith.constant 0 : i32
    %c0_i32_0 = arith.constant 0 : i32
    %c0_i32_1 = arith.constant 0 : i32
    return %c0_i32, %c0_i32_0 : i32, i32
  }
  func.func @transform_8(%arg0: i32) -> (i32, i32) {
    %c0_i32 = arith.constant 0 : i32
    %c0_i32_0 = arith.constant 0 : i32
    %c0_i32_1 = arith.constant 0 : i32
    return %c0_i32, %c0_i32_0 : i32, i32
  }
  func.func @transform_9(%arg0: i32) -> (i32, i32) {
    %c0_i32 = arith.constant 0 : i32
    %c0_i32_0 = arith.constant 0 : i32
    %c0_i32_1 = arith.constant 0 : i32
    return %c0_i32, %c0_i32_0 : i32, i32
  }
  func.func @transform_10(%arg0: i32) -> (i32, i32) {
    %c0_i32 = arith.constant 0 : i32
    %c0_i32_0 = arith.constant 0 : i32
    %c0_i32_1 = arith.constant 0 : i32
    return %c0_i32, %c0_i32_0 : i32, i32
  }
  func.func @transform_11(%arg0: i32) -> (i32, i32) {
    %c0_i32 = arith.constant 0 : i32
    %c0_i32_0 = arith.constant 0 : i32
    %c0_i32_1 = arith.constant 0 : i32
    return %c0_i32, %c0_i32_0 : i32, i32
  }
  func.func @transform_12(%arg0: i32) -> (i32, i32) {
    %c0_i32 = arith.constant 0 : i32
    %c0_i32_0 = arith.constant 0 : i32
    %c0_i32_1 = arith.constant 0 : i32
    return %c0_i32, %c0_i32_0 : i32, i32
  }
  func.func @transform_13(%arg0: i32) -> (i32, i32) {
    %c0_i32 = arith.constant 0 : i32
    %c0_i32_0 = arith.constant 0 : i32
    %c0_i32_1 = arith.constant 0 : i32
    return %c0_i32, %c0_i32_0 : i32, i32
  }
  func.func @transform_14(%arg0: i32) -> (i32, i32) {
    %c0_i32 = arith.constant 0 : i32
    %c0_i32_0 = arith.constant 0 : i32
    %c0_i32_1 = arith.constant 0 : i32
    return %c0_i32, %c0_i32_0 : i32, i32
  }
  func.func @transform_15(%arg0: i32) -> (i32, i32) {
    %c0_i32 = arith.constant 0 : i32
    %c0_i32_0 = arith.constant 0 : i32
    return %arg0, %c0_i32 : i32, i32
  }
}

</mosaic_0001>

<llo_original>
// kernel: tpu_custom_call.1
$region0: #{tpu_custom_call.1}
  #allocation0 [shape = 'u32[]', space=smem, size = 0x4, offset = 0x4, fixed_abs, tag = 'smem constant byte address 0x4 - core index']
  #allocation1 [shape = 'u32[72,128]{1,0:T(1,128)}', space=vmem, size = 0x9000, scoped, tag = 'internal scratch']
  %s0 = inlined_call_operand.vmem [shape: bf16[128,24], index: 0, kind: input, shape index: {}]
  %s1 = inlined_call_operand.vmem [shape: bf16[72,64], index: 1, kind: input, shape index: {}]
  %s2 = inlined_call_operand.vmem [shape: f32[1,64], index: 2, kind: input, shape index: {}]
  %s3 = inlined_call_operand.vmem [shape: f32[1,64], index: 3, kind: input, shape index: {}]
  %s4 = inlined_call_operand.vmem [shape: bf16[192,64], index: 4, kind: input, shape index: {}]
  %s5 = inlined_call_operand.vmem [shape: f32[1,64], index: 5, kind: input, shape index: {}]
  %s6 = inlined_call_operand.vmem [shape: f32[1,64], index: 6, kind: input, shape index: {}]
  %s7 = inlined_call_operand.vmem [shape: bf16[192,64], index: 7, kind: input, shape index: {}]
  %s8 = inlined_call_operand.vmem [shape: f32[1,64], index: 8, kind: input, shape index: {}]
  %s9 = inlined_call_operand.vmem [shape: f32[1,64], index: 9, kind: input, shape index: {}]
  %s10 = inlined_call_operand.vmem [shape: bf16[192,64], index: 10, kind: input, shape index: {}]
  %s11 = inlined_call_operand.vmem [shape: f32[1,64], index: 11, kind: input, shape index: {}]
  %s12 = inlined_call_operand.vmem [shape: f32[1,64], index: 12, kind: input, shape index: {}]
  %s13 = inlined_call_operand.vmem [shape: bf16[128,6], index: 13, kind: input, shape index: {}]
  %s14 = inlined_call_operand.vmem [shape: f32[1,6], index: 14, kind: input, shape index: {}]
  %s15 = inlined_call_operand.vmem [shape: f32[16,6], index: 15, kind: output, shape index: {}]
  %s16 = sld [smem:[#allocation0]]
  $region70: #{tpu_custom_call.1} parent=0
    _
  %s18 = ssub.s32 1, %s16
  %s19 = scalar_select 0, %s18, %s16
  // Predicated region
  $region2: #{tpu_custom_call.1} parent=0 // pred_check
    _
  $region3: #{tpu_custom_call.1} parent=0 // pred_check_branch
    %21 = sbr.rel (0) target = $region5
  $region4: #{tpu_custom_call.1} parent=0 // pred_region
    _
  $region5: #{tpu_custom_call.1} parent=0 // pred_fallthru
    _
  // Predicated region
  $region6: #{tpu_custom_call.1} parent=0 // pred_check
    _
  $region7: #{tpu_custom_call.1} parent=0 // pred_check_branch
    %23 = sbr.rel (0) target = $region9
  $region8: #{tpu_custom_call.1} parent=0 // pred_region
    _
  $region9: #{tpu_custom_call.1} parent=0 // pred_fallthru
    _
  // Predicated region
  $region10: #{tpu_custom_call.1} parent=0 // pred_check
    _
  $region11: #{tpu_custom_call.1} parent=0 // pred_check_branch
    %25 = sbr.rel (0) target = $region13
  $region12: #{tpu_custom_call.1} parent=0 // pred_region
    _
  $region13: #{tpu_custom_call.1} parent=0 // pred_fallthru
    _
  // Predicated region
  $region14: #{tpu_custom_call.1} parent=0 // pred_check
    _
  $region15: #{tpu_custom_call.1} parent=0 // pred_check_branch
    %27 = sbr.rel (0) target = $region17
  $region16: #{tpu_custom_call.1} parent=0 // pred_region
    _
  $region17: #{tpu_custom_call.1} parent=0 // pred_fallthru
    _
  // Predicated region
  $region18: #{tpu_custom_call.1} parent=0 // pred_check
    _
  $region19: #{tpu_custom_call.1} parent=0 // pred_check_branch
    %29 = sbr.rel (0) target = $region21
  $region20: #{tpu_custom_call.1} parent=0 // pred_region
    _
  $region21: #{tpu_custom_call.1} parent=0 // pred_fallthru
    _
  // Predicated region
  $region22: #{tpu_custom_call.1} parent=0 // pred_check
    _
  $region23: #{tpu_custom_call.1} parent=0 // pred_check_branch
    %31 = sbr.rel (0) target = $region25
  $region24: #{tpu_custom_call.1} parent=0 // pred_region
    _
  $region25: #{tpu_custom_call.1} parent=0 // pred_fallthru
    _
  // Predicated region
  $region26: #{tpu_custom_call.1} parent=0 // pred_check
    _
  $region27: #{tpu_custom_call.1} parent=0 // pred_check_branch
    %33 = sbr.rel (0) target = $region29
  $region28: #{tpu_custom_call.1} parent=0 // pred_region
    _
  $region29: #{tpu_custom_call.1} parent=0 // pred_fallthru
    _
  // Predicated region
  $region30: #{tpu_custom_call.1} parent=0 // pred_check
    _
  $region31: #{tpu_custom_call.1} parent=0 // pred_check_branch
    %35 = sbr.rel (0) target = $region33
  $region32: #{tpu_custom_call.1} parent=0 // pred_region
    _
  $region33: #{tpu_custom_call.1} parent=0 // pred_fallthru
    _
  // Predicated region
  $region34: #{tpu_custom_call.1} parent=0 // pred_check
    _
  $region35: #{tpu_custom_call.1} parent=0 // pred_check_branch
    %37 = sbr.rel (0) target = $region37
  $region36: #{tpu_custom_call.1} parent=0 // pred_region
    _
  $region37: #{tpu_custom_call.1} parent=0 // pred_fallthru
    _
  // Predicated region
  $region38: #{tpu_custom_call.1} parent=0 // pred_check
    _
  $region39: #{tpu_custom_call.1} parent=0 // pred_check_branch
    %39 = sbr.rel (0) target = $region41
  $region40: #{tpu_custom_call.1} parent=0 // pred_region
    _
  $region41: #{tpu_custom_call.1} parent=0 // pred_fallthru
    _
  // Predicated region
  $region42: #{tpu_custom_call.1} parent=0 // pred_check
    _
  $region43: #{tpu_custom_call.1} parent=0 // pred_check_branch
    %41 = sbr.rel (0) target = $region45
  $region44: #{tpu_custom_call.1} parent=0 // pred_region
    _
  $region45: #{tpu_custom_call.1} parent=0 // pred_fallthru
    _
  // Predicated region
  $region46: #{tpu_custom_call.1} parent=0 // pred_check
    _
  $region47: #{tpu_custom_call.1} parent=0 // pred_check_branch
    %43 = sbr.rel (0) target = $region49
  $region48: #{tpu_custom_call.1} parent=0 // pred_region
    _
  $region49: #{tpu_custom_call.1} parent=0 // pred_fallthru
    _
  // Predicated region
  $region50: #{tpu_custom_call.1} parent=0 // pred_check
    _
  $region51: #{tpu_custom_call.1} parent=0 // pred_check_branch
    %45 = sbr.rel (0) target = $region53
  $region52: #{tpu_custom_call.1} parent=0 // pred_region
    _
  $region53: #{tpu_custom_call.1} parent=0 // pred_fallthru
    _
  // Predicated region
  $region54: #{tpu_custom_call.1} parent=0 // pred_check
    _
  $region55: #{tpu_custom_call.1} parent=0 // pred_check_branch
    %47 = sbr.rel (0) target = $region57
  $region56: #{tpu_custom_call.1} parent=0 // pred_region
    _
  $region57: #{tpu_custom_call.1} parent=0 // pred_fallthru
    _
  // Predicated region
  $region58: #{tpu_custom_call.1} parent=0 // pred_check
    _
  $region59: #{tpu_custom_call.1} parent=0 // pred_check_branch
    %49 = sbr.rel (0) target = $region61
  $region60: #{tpu_custom_call.1} parent=0 // pred_region
    _
  $region61: #{tpu_custom_call.1} parent=0 // pred_fallthru
    _
  %v51 = vld [vmem:[%s0] sm:$0xf]
  %v52 = vld [vmem:[%s0 + $0x4] sm:$0xf]
  %v53 = vld [vmem:[%s0 + $0x8] sm:$0xf]
  %v54 = vld [vmem:[%s0 + $0xc] sm:$0xf]
  %v55 = vld [vmem:[%s0 + $0x10] sm:$0xf]
  %v56 = vld [vmem:[%s0 + $0x14] sm:$0xf]
  %v57 = vld [vmem:[%s0 + $0x18] sm:$0xf]
  %v58 = vld [vmem:[%s0 + $0x1c] sm:$0xf]
  %v59 = vld [vmem:[%s0 + $0x20] sm:$0xf]
  %v60 = vld [vmem:[%s0 + $0x24] sm:$0xf]
  %v61 = vld [vmem:[%s0 + $0x28] sm:$0xf]
  %v62 = vld [vmem:[%s0 + $0x2c] sm:$0xf]
  %v63 = vld [vmem:[%s0 + $0x30] sm:$0xf]
  %v64 = vld [vmem:[%s0 + $0x34] sm:$0xf]
  %v65 = vld [vmem:[%s0 + $0x38] sm:$0xf]
  %v66 = vld [vmem:[%s0 + $0x3c] sm:$0xf]
  %v81 = vunpack.c.l.b16 %v51
  %v82 = vunpack.c.l.b16 %v52
  %v83 = vunpack.c.l.b16 %v53
  %v84 = vunpack.c.l.b16 %v54
  %v85 = vunpack.c.l.b16 %v55
  %v86 = vunpack.c.l.b16 %v56
  %v87 = vunpack.c.l.b16 %v57
  %v88 = vunpack.c.l.b16 %v58
  %v89 = vunpack.c.l.b16 %v59
  %v90 = vunpack.c.l.b16 %v60
  %v91 = vunpack.c.l.b16 %v61
  %v92 = vunpack.c.l.b16 %v62
  %v93 = vunpack.c.l.b16 %v63
  %v94 = vunpack.c.l.b16 %v64
  %v95 = vpack.c.b16 %v82, %v81
  %v96 = vpack.c.b16 %v84, %v83
  %v97 = vpack.c.b16 %v86, %v85
  %v98 = vpack.c.b16 %v88, %v87
  %v99 = vpack.c.b16 %v90, %v89
  %v100 = vpack.c.b16 %v92, %v91
  %v101 = vpack.c.b16 %v94, %v93
  %v104 = vunpack.c.l.b16 %v65
  %v105 = vunpack.c.l.b16 %v66
  %v106 = vpack.c.b16 %v105, %v104
  %107 = vrot.lane.b32.xlu0 %v95, 24
  %v108 = vpop.permute.xlu0 %107
  %109 = vrot.lane.b32.xlu0 %v96, 24
  %v110 = vpop.permute.xlu0 %109
  %111 = vrot.lane.b32.xlu0 %v97, 24
  %v112 = vpop.permute.xlu0 %111
  %113 = vrot.lane.b32.xlu0 %v98, 24
  %v114 = vpop.permute.xlu0 %113
  %115 = vrot.lane.b32.xlu0 %v99, 24
  %v116 = vpop.permute.xlu0 %115
  %117 = vrot.lane.b32.xlu0 %v100, 24
  %v118 = vpop.permute.xlu0 %117
  %119 = vrot.lane.b32.xlu0 %v101, 24
  %v120 = vpop.permute.xlu0 %119
  %121 = vrot.lane.b32.xlu0 %v106, 24
  %v122 = vpop.permute.xlu0 %121
  %124 = vrot.lane.b32.xlu0 %v96, 48
  %v125 = vpop.permute.xlu0 %124
  %126 = vrot.lane.b32.xlu0 %v97, 48
  %v127 = vpop.permute.xlu0 %126
  %128 = vrot.lane.b32.xlu0 %v98, 48
  %v129 = vpop.permute.xlu0 %128
  %130 = vrot.lane.b32.xlu0 %v99, 48
  %v131 = vpop.permute.xlu0 %130
  %132 = vrot.lane.b32.xlu0 %v100, 48
  %v133 = vpop.permute.xlu0 %132
  %134 = vrot.lane.b32.xlu0 %v101, 48
  %v135 = vpop.permute.xlu0 %134
  %136 = vrot.lane.b32.xlu0 %v106, 48
  %v137 = vpop.permute.xlu0 %136
  %138 = vrot.lane.b32.xlu0 0, 48
  %v139 = vpop.permute.xlu0 %138
  %vm140 = vcmask 195584
  %v143 = vsel %vm140, 0, %v108
  %v146 = vsel %vm140, %v95, %v110
  %v149 = vsel %vm140, %v96, %v112
  %v152 = vsel %vm140, %v97, %v114
  %v155 = vsel %vm140, %v98, %v116
  %v158 = vsel %vm140, %v99, %v118
  %v161 = vsel %vm140, %v100, %v120
  %v164 = vsel %vm140, %v101, %v122
  %vm165 = vcmask 392192
  %v167 = vsel %vm165, %v143, %v125
  %v169 = vsel %vm165, %v146, %v127
  %v171 = vsel %vm165, %v149, %v129
  %v173 = vsel %vm165, %v152, %v131
  %v175 = vsel %vm165, %v155, %v133
  %v177 = vsel %vm165, %v158, %v135
  %v179 = vsel %vm165, %v161, %v137
  %v181 = vsel %vm165, %v164, %v139
  %v182 = vld [vmem:[%s1] sm:$0xf]
  %v183 = vld [vmem:[%s1 + $0x4] sm:$0xf]
  %v184 = vld [vmem:[%s1 + $0x8] sm:$0xf]
  %v185 = vld [vmem:[%s1 + $0xc] sm:$0xf]
  %v186 = vld [vmem:[%s1 + $0x10] sm:$0xf]
  %v187 = vld [vmem:[%s1 + $0x14] sm:$0xf]
  %v188 = vld [vmem:[%s1 + $0x18] sm:$0xf]
  %v189 = vld [vmem:[%s1 + $0x1c] sm:$0xf]
  %v190 = vld [vmem:[%s1 + $0x20] sm:$0xf]
  %v200 = vunpack.c.l.b16 %v182
  %v201 = vunpack.c.l.b16 %v183
  %v202 = vunpack.c.l.b16 %v184
  %v203 = vunpack.c.l.b16 %v185
  %v204 = vunpack.c.l.b16 %v186
  %v205 = vunpack.c.l.b16 %v187
  %v206 = vunpack.c.l.b16 %v188
  %v207 = vunpack.c.l.b16 %v189
  %v208 = vunpack.c.l.b16 %v190
  %v209 = vpack.c.b16 %v201, %v200
  %v210 = vpack.c.b16 %v203, %v202
  %v211 = vpack.c.b16 %v205, %v204
  %v212 = vpack.c.b16 %v207, %v206
  %v213 = vpack.c.b16 %v208, %v208
  %vm218 = vcmask 588800
  %v219 = vsel %vm218, %v167, 0
  %v221 = vsel %vm218, %v169, 0
  %v223 = vsel %vm218, %v171, 0
  %v225 = vsel %vm218, %v173, 0
  %v227 = vsel %vm218, %v175, 0
  %v229 = vsel %vm218, %v177, 0
  %v231 = vsel %vm218, %v179, 0
  %v233 = vsel %vm218, %v181, 0
  %vm235 = vcmask 1043456
  %v237 = vsel %vm235, %v213, 0
  %239 = vmatpush.bf16.msra.mxu0 0
  %240 = vmatpush.bf16.msra.mxu0 0
  %241 = vmatpush.bf16.msra.mxu0 0
  %242 = vmatpush.bf16.msra.mxu0 %v237
  %243 = vmatpush.bf16.msra.mxu0 %v212
  %244 = vmatpush.bf16.msra.mxu0 %v211
  %245 = vmatpush.bf16.msra.mxu0 %v210
  %246 = vmatpush.bf16.msra.mxu0 %v209
  %247 = vmatmul.bf16.gmra.mxu0 %v219
  %v248 = vpop.f32.mrf.mxu0
  %v249 = vadd.f32 0.0, %v248
  %v250 = vpop.f32.mrf.mxu0
  %v251 = vadd.f32 0.0, %v250
  %252 = vmatmul.bf16.gmra.mxu0 %v221
  %v253 = vpop.f32.mrf.mxu0
  %v254 = vadd.f32 0.0, %v253
  %v255 = vpop.f32.mrf.mxu0
  %v256 = vadd.f32 0.0, %v255
  %257 = vmatmul.bf16.gmra.mxu0 %v223
  %v258 = vpop.f32.mrf.mxu0
  %v259 = vadd.f32 0.0, %v258
  %v260 = vpop.f32.mrf.mxu0
  %v261 = vadd.f32 0.0, %v260
  %262 = vmatmul.bf16.gmra.mxu0 %v225
  %v263 = vpop.f32.mrf.mxu0
  %v264 = vadd.f32 0.0, %v263
  %v265 = vpop.f32.mrf.mxu0
  %v266 = vadd.f32 0.0, %v265
  %267 = vmatmul.bf16.gmra.mxu0 %v227
  %v268 = vpop.f32.mrf.mxu0
  %v269 = vadd.f32 0.0, %v268
  %v270 = vpop.f32.mrf.mxu0
  %v271 = vadd.f32 0.0, %v270
  %272 = vmatmul.bf16.gmra.mxu0 %v229
  %v273 = vpop.f32.mrf.mxu0
  %v274 = vadd.f32 0.0, %v273
  %v275 = vpop.f32.mrf.mxu0
  %v276 = vadd.f32 0.0, %v275
  %277 = vmatmul.bf16.gmra.mxu0 %v231
  %v278 = vpop.f32.mrf.mxu0
  %v279 = vadd.f32 0.0, %v278
  %v280 = vpop.f32.mrf.mxu0
  %v281 = vadd.f32 0.0, %v280
  %282 = vmatmul.bf16.gmra.mxu0 %v233
  %v283 = vpop.f32.mrf.mxu0
  %v284 = vadd.f32 0.0, %v283
  %v285 = vpop.f32.mrf.mxu0
  %v286 = vadd.f32 0.0, %v285
  %287 = vdwg.mxu0
  %v288 = vld [vmem:[%s2] sm:$0x1]
  %v290 = vperm.slane %v288, 0
  %v292 = vmul.f32 %v249, %v290
  %v293 = vmul.f32 %v251, %v290
  %v294 = vmul.f32 %v254, %v290
  %v295 = vmul.f32 %v256, %v290
  %v296 = vmul.f32 %v259, %v290
  %v297 = vmul.f32 %v261, %v290
  %v298 = vmul.f32 %v264, %v290
  %v299 = vmul.f32 %v266, %v290
  %v300 = vmul.f32 %v269, %v290
  %v301 = vmul.f32 %v271, %v290
  %v302 = vmul.f32 %v274, %v290
  %v303 = vmul.f32 %v276, %v290
  %v304 = vmul.f32 %v279, %v290
  %v305 = vmul.f32 %v281, %v290
  %v306 = vmul.f32 %v284, %v290
  %v307 = vmul.f32 %v286, %v290
  %v308 = vld [vmem:[%s3] sm:$0x1]
  %v310 = vperm.slane %v308, 0
  %v312 = vadd.f32 %v292, %v310
  %v313 = vadd.f32 %v293, %v310
  %v314 = vadd.f32 %v294, %v310
  %v315 = vadd.f32 %v295, %v310
  %v316 = vadd.f32 %v296, %v310
  %v317 = vadd.f32 %v297, %v310
  %v318 = vadd.f32 %v298, %v310
  %v319 = vadd.f32 %v299, %v310
  %v320 = vadd.f32 %v300, %v310
  %v321 = vadd.f32 %v301, %v310
  %v322 = vadd.f32 %v302, %v310
  %v323 = vadd.f32 %v303, %v310
  %v324 = vadd.f32 %v304, %v310
  %v325 = vadd.f32 %v305, %v310
  %v326 = vadd.f32 %v306, %v310
  %v327 = vadd.f32 %v307, %v310
  %v328 = vmax.f32 %v312, 0.0
  %v329 = vmax.f32 %v313, 0.0
  %v330 = vmax.f32 %v314, 0.0
  %v331 = vmax.f32 %v315, 0.0
  %v332 = vmax.f32 %v316, 0.0
  %v333 = vmax.f32 %v317, 0.0
  %v334 = vmax.f32 %v318, 0.0
  %v335 = vmax.f32 %v319, 0.0
  %v336 = vmax.f32 %v320, 0.0
  %v337 = vmax.f32 %v321, 0.0
  %v338 = vmax.f32 %v322, 0.0
  %v339 = vmax.f32 %v323, 0.0
  %v340 = vmax.f32 %v324, 0.0
  %v341 = vmax.f32 %v325, 0.0
  %v342 = vmax.f32 %v326, 0.0
  %v343 = vmax.f32 %v327, 0.0
  %v344 = vpack.c.bf16 %v328, %v328
  %v345 = vpack.c.bf16 %v329, %v329
  %v346 = vpack.c.bf16 %v330, %v330
  %v347 = vpack.c.bf16 %v331, %v331
  %v348 = vpack.c.bf16 %v332, %v332
  %v349 = vpack.c.bf16 %v333, %v333
  %v350 = vpack.c.bf16 %v334, %v334
  %v351 = vpack.c.bf16 %v335, %v335
  %v352 = vpack.c.bf16 %v336, %v336
  %v353 = vpack.c.bf16 %v337, %v337
  %v354 = vpack.c.bf16 %v338, %v338
  %v355 = vpack.c.bf16 %v339, %v339
  %v356 = vpack.c.bf16 %v340, %v340
  %v357 = vpack.c.bf16 %v341, %v341
  %v358 = vpack.c.bf16 %v342, %v342
  %v359 = vpack.c.bf16 %v343, %v343
  %v374 = vunpack.c.l.b16 %v344
  %v375 = vunpack.c.l.b16 %v345
  %v376 = vunpack.c.l.b16 %v346
  %v377 = vunpack.c.l.b16 %v347
  %v378 = vunpack.c.l.b16 %v348
  %v379 = vunpack.c.l.b16 %v349
  %v380 = vunpack.c.l.b16 %v350
  %v381 = vunpack.c.l.b16 %v351
  %v382 = vunpack.c.l.b16 %v352
  %v383 = vunpack.c.l.b16 %v353
  %v384 = vunpack.c.l.b16 %v354
  %v385 = vunpack.c.l.b16 %v355
  %v386 = vunpack.c.l.b16 %v356
  %v387 = vunpack.c.l.b16 %v357
  %v388 = vpack.c.b16 %v375, %v374
  %v389 = vpack.c.b16 %v377, %v376
  %v390 = vpack.c.b16 %v379, %v378
  %v391 = vpack.c.b16 %v381, %v380
  %v392 = vpack.c.b16 %v383, %v382
  %v393 = vpack.c.b16 %v385, %v384
  %v394 = vpack.c.b16 %v387, %v386
  %v397 = vunpack.c.l.b16 %v358
  %v398 = vunpack.c.l.b16 %v359
  %v399 = vpack.c.b16 %v398, %v397
  %400 = vrot.lane.b32.xlu0 %v388, 64
  %v401 = vpop.permute.xlu0 %400
  %402 = vrot.lane.b32.xlu0 %v389, 64
  %v403 = vpop.permute.xlu0 %402
  %404 = vrot.lane.b32.xlu0 %v390, 64
  %v405 = vpop.permute.xlu0 %404
  %406 = vrot.lane.b32.xlu0 %v391, 64
  %v407 = vpop.permute.xlu0 %406
  %408 = vrot.lane.b32.xlu0 %v392, 64
  %v409 = vpop.permute.xlu0 %408
  %410 = vrot.lane.b32.xlu0 %v393, 64
  %v411 = vpop.permute.xlu0 %410
  %412 = vrot.lane.b32.xlu0 %v394, 64
  %v413 = vpop.permute.xlu0 %412
  %414 = vrot.lane.b32.xlu0 %v399, 64
  %v415 = vpop.permute.xlu0 %414
  %vm416 = vcmask 523264
  %v418 = vsel %vm416, 0, %v401
  %v422 = vsel %vm416, %v388, %v403
  %v426 = vsel %vm416, %v389, %v405
  %v430 = vsel %vm416, %v390, %v407
  %v434 = vsel %vm416, %v391, %v409
  %v438 = vsel %vm416, %v392, %v411
  %v442 = vsel %vm416, %v393, %v413
  %v446 = vsel %vm416, %v394, %v415
  %v448 = vld [vmem:[%s4] sm:$0xf]
  %v449 = vld [vmem:[%s4 + $0x4] sm:$0xf]
  %v450 = vld [vmem:[%s4 + $0x8] sm:$0xf]
  %v451 = vld [vmem:[%s4 + $0xc] sm:$0xf]
  %v452 = vld [vmem:[%s4 + $0x10] sm:$0xf]
  %v453 = vld [vmem:[%s4 + $0x14] sm:$0xf]
  %v454 = vld [vmem:[%s4 + $0x18] sm:$0xf]
  %v455 = vld [vmem:[%s4 + $0x1c] sm:$0xf]
  %v456 = vld [vmem:[%s4 + $0x20] sm:$0xf]
  %v457 = vld [vmem:[%s4 + $0x24] sm:$0xf]
  %v458 = vld [vmem:[%s4 + $0x28] sm:$0xf]
  %v459 = vld [vmem:[%s4 + $0x2c] sm:$0xf]
  %v460 = vld [vmem:[%s4 + $0x30] sm:$0xf]
  %v461 = vld [vmem:[%s4 + $0x34] sm:$0xf]
  %v462 = vld [vmem:[%s4 + $0x38] sm:$0xf]
  %v463 = vld [vmem:[%s4 + $0x3c] sm:$0xf]
  %v464 = vld [vmem:[%s4 + $0x40] sm:$0xf]
  %v465 = vld [vmem:[%s4 + $0x44] sm:$0xf]
  %v466 = vld [vmem:[%s4 + $0x48] sm:$0xf]
  %v467 = vld [vmem:[%s4 + $0x4c] sm:$0xf]
  %v468 = vld [vmem:[%s4 + $0x50] sm:$0xf]
  %v469 = vld [vmem:[%s4 + $0x54] sm:$0xf]
  %v470 = vld [vmem:[%s4 + $0x58] sm:$0xf]
  %v471 = vld [vmem:[%s4 + $0x5c] sm:$0xf]
  %v496 = vunpack.c.l.b16 %v448
  %v497 = vunpack.c.l.b16 %v449
  %v498 = vunpack.c.l.b16 %v450
  %v499 = vunpack.c.l.b16 %v451
  %v500 = vunpack.c.l.b16 %v452
  %v501 = vunpack.c.l.b16 %v453
  %v502 = vunpack.c.l.b16 %v454
  %v503 = vunpack.c.l.b16 %v455
  %v504 = vunpack.c.l.b16 %v456
  %v505 = vunpack.c.l.b16 %v457
  %v506 = vunpack.c.l.b16 %v458
  %v507 = vunpack.c.l.b16 %v459
  %v508 = vunpack.c.l.b16 %v460
  %v509 = vunpack.c.l.b16 %v461
  %v510 = vunpack.c.l.b16 %v462
  %v511 = vunpack.c.l.b16 %v463
  %v512 = vunpack.c.l.b16 %v464
  %v513 = vunpack.c.l.b16 %v465
  %v514 = vunpack.c.l.b16 %v466
  %v515 = vunpack.c.l.b16 %v467
  %v516 = vunpack.c.l.b16 %v468
  %v517 = vunpack.c.l.b16 %v469
  %v518 = vunpack.c.l.b16 %v470
  %v519 = vunpack.c.l.b16 %v471
  %v520 = vpack.c.b16 %v497, %v496
  %v521 = vpack.c.b16 %v499, %v498
  %v522 = vpack.c.b16 %v501, %v500
  %v523 = vpack.c.b16 %v503, %v502
  %v524 = vpack.c.b16 %v505, %v504
  %v525 = vpack.c.b16 %v507, %v506
  %v526 = vpack.c.b16 %v509, %v508
  %v527 = vpack.c.b16 %v511, %v510
  %v528 = vpack.c.b16 %v513, %v512
  %v529 = vpack.c.b16 %v515, %v514
  %v530 = vpack.c.b16 %v517, %v516
  %v531 = vpack.c.b16 %v519, %v518
  %v544 = vsel %vm416, %v389, 0
  %v546 = vsel %vm416, %v390, 0
  %v548 = vsel %vm416, %v391, 0
  %v550 = vsel %vm416, %v392, 0
  %v552 = vsel %vm416, %v393, 0
  %v554 = vsel %vm416, %v394, 0
  %v557 = vsel %vm416, %v399, 0
  %v559 = vsel %vm416, 0, 0
  %561 = vmatpush.bf16.msra.mxu0 %v527
  %562 = vmatpush.bf16.msra.mxu0 %v526
  %563 = vmatpush.bf16.msra.mxu0 %v525
  %564 = vmatpush.bf16.msra.mxu0 %v524
  %565 = vmatpush.bf16.msra.mxu0 %v523
  %566 = vmatpush.bf16.msra.mxu0 %v522
  %567 = vmatpush.bf16.msra.mxu0 %v521
  %568 = vmatpush.bf16.msra.mxu0 %v520
  %569 = vmatmul.bf16.gmra.mxu0 %v418
  %v570 = vpop.f32.mrf.mxu0
  %v571 = vadd.f32 0.0, %v570
  %v572 = vpop.f32.mrf.mxu0
  %v573 = vadd.f32 0.0, %v572
  %574 = vmatmul.bf16.gmra.mxu0 %v422
  %v575 = vpop.f32.mrf.mxu0
  %v576 = vadd.f32 0.0, %v575
  %v577 = vpop.f32.mrf.mxu0
  %v578 = vadd.f32 0.0, %v577
  %579 = vmatmul.bf16.gmra.mxu0 %v426
  %v580 = vpop.f32.mrf.mxu0
  %v581 = vadd.f32 0.0, %v580
  %v582 = vpop.f32.mrf.mxu0
  %v583 = vadd.f32 0.0, %v582
  %584 = vmatmul.bf16.gmra.mxu0 %v430
  %v585 = vpop.f32.mrf.mxu0
  %v586 = vadd.f32 0.0, %v585
  %v587 = vpop.f32.mrf.mxu0
  %v588 = vadd.f32 0.0, %v587
  %589 = vmatmul.bf16.gmra.mxu0 %v434
  %v590 = vpop.f32.mrf.mxu0
  %v591 = vadd.f32 0.0, %v590
  %v592 = vpop.f32.mrf.mxu0
  %v593 = vadd.f32 0.0, %v592
  %594 = vmatmul.bf16.gmra.mxu0 %v438
  %v595 = vpop.f32.mrf.mxu0
  %v596 = vadd.f32 0.0, %v595
  %v597 = vpop.f32.mrf.mxu0
  %v598 = vadd.f32 0.0, %v597
  %599 = vmatmul.bf16.gmra.mxu0 %v442
  %v600 = vpop.f32.mrf.mxu0
  %v601 = vadd.f32 0.0, %v600
  %v602 = vpop.f32.mrf.mxu0
  %v603 = vadd.f32 0.0, %v602
  %604 = vmatmul.bf16.gmra.mxu0 %v446
  %v605 = vpop.f32.mrf.mxu0
  %v606 = vadd.f32 0.0, %v605
  %v607 = vpop.f32.mrf.mxu0
  %v608 = vadd.f32 0.0, %v607
  %609 = vdwg.mxu0
  %610 = vmatpush.bf16.msra.mxu0 0
  %611 = vmatpush.bf16.msra.mxu0 0
  %612 = vmatpush.bf16.msra.mxu0 0
  %613 = vmatpush.bf16.msra.mxu0 0
  %614 = vmatpush.bf16.msra.mxu0 %v531
  %615 = vmatpush.bf16.msra.mxu0 %v530
  %616 = vmatpush.bf16.msra.mxu0 %v529
  %617 = vmatpush.bf16.msra.mxu0 %v528
  %618 = vmatmul.bf16.gmra.mxu0 %v544
  %v619 = vpop.f32.mrf.mxu0
  %v620 = vadd.f32 %v571, %v619
  %v621 = vpop.f32.mrf.mxu0
  %v622 = vadd.f32 %v573, %v621
  %623 = vmatmul.bf16.gmra.mxu0 %v546
  %v624 = vpop.f32.mrf.mxu0
  %v625 = vadd.f32 %v576, %v624
  %v626 = vpop.f32.mrf.mxu0
  %v627 = vadd.f32 %v578, %v626
  %628 = vmatmul.bf16.gmra.mxu0 %v548
  %v629 = vpop.f32.mrf.mxu0
  %v630 = vadd.f32 %v581, %v629
  %v631 = vpop.f32.mrf.mxu0
  %v632 = vadd.f32 %v583, %v631
  %633 = vmatmul.bf16.gmra.mxu0 %v550
  %v634 = vpop.f32.mrf.mxu0
  %v635 = vadd.f32 %v586, %v634
  %v636 = vpop.f32.mrf.mxu0
  %v637 = vadd.f32 %v588, %v636
  %638 = vmatmul.bf16.gmra.mxu0 %v552
  %v639 = vpop.f32.mrf.mxu0
  %v640 = vadd.f32 %v591, %v639
  %v641 = vpop.f32.mrf.mxu0
  %v642 = vadd.f32 %v593, %v641
  %643 = vmatmul.bf16.gmra.mxu0 %v554
  %v644 = vpop.f32.mrf.mxu0
  %v645 = vadd.f32 %v596, %v644
  %v646 = vpop.f32.mrf.mxu0
  %v647 = vadd.f32 %v598, %v646
  %648 = vmatmul.bf16.gmra.mxu0 %v557
  %v649 = vpop.f32.mrf.mxu0
  %v650 = vadd.f32 %v601, %v649
  %v651 = vpop.f32.mrf.mxu0
  %v652 = vadd.f32 %v603, %v651
  %653 = vmatmul.bf16.gmra.mxu0 %v559
  %v654 = vpop.f32.mrf.mxu0
  %v655 = vadd.f32 %v606, %v654
  %v656 = vpop.f32.mrf.mxu0
  %v657 = vadd.f32 %v608, %v656
  %658 = vdwg.mxu0
  %v659 = vld [vmem:[%s5] sm:$0x1]
  %v661 = vperm.slane %v659, 0
  %v663 = vmul.f32 %v620, %v661
  %v664 = vmul.f32 %v622, %v661
  %v665 = vmul.f32 %v625, %v661
  %v666 = vmul.f32 %v627, %v661
  %v667 = vmul.f32 %v630, %v661
  %v668 = vmul.f32 %v632, %v661
  %v669 = vmul.f32 %v635, %v661
  %v670 = vmul.f32 %v637, %v661
  %v671 = vmul.f32 %v640, %v661
  %v672 = vmul.f32 %v642, %v661
  %v673 = vmul.f32 %v645, %v661
  %v674 = vmul.f32 %v647, %v661
  %v675 = vmul.f32 %v650, %v661
  %v676 = vmul.f32 %v652, %v661
  %v677 = vmul.f32 %v655, %v661
  %v678 = vmul.f32 %v657, %v661
  %v679 = vld [vmem:[%s6] sm:$0x1]
  %v681 = vperm.slane %v679, 0
  %v683 = vadd.f32 %v663, %v681
  %v684 = vadd.f32 %v664, %v681
  %v685 = vadd.f32 %v665, %v681
  %v686 = vadd.f32 %v666, %v681
  %v687 = vadd.f32 %v667, %v681
  %v688 = vadd.f32 %v668, %v681
  %v689 = vadd.f32 %v669, %v681
  %v690 = vadd.f32 %v670, %v681
  %v691 = vadd.f32 %v671, %v681
  %v692 = vadd.f32 %v672, %v681
  %v693 = vadd.f32 %v673, %v681
  %v694 = vadd.f32 %v674, %v681
  %v695 = vadd.f32 %v675, %v681
  %v696 = vadd.f32 %v676, %v681
  %v697 = vadd.f32 %v677, %v681
  %v698 = vadd.f32 %v678, %v681
  %v699 = vmax.f32 %v683, 0.0
  %v700 = vmax.f32 %v684, 0.0
  %v701 = vmax.f32 %v685, 0.0
  %v702 = vmax.f32 %v686, 0.0
  %v703 = vmax.f32 %v687, 0.0
  %v704 = vmax.f32 %v688, 0.0
  %v705 = vmax.f32 %v689, 0.0
  %v706 = vmax.f32 %v690, 0.0
  %v707 = vmax.f32 %v691, 0.0
  %v708 = vmax.f32 %v692, 0.0
  %v709 = vmax.f32 %v693, 0.0
  %v710 = vmax.f32 %v694, 0.0
  %v711 = vmax.f32 %v695, 0.0
  %v712 = vmax.f32 %v696, 0.0
  %v713 = vmax.f32 %v697, 0.0
  %v714 = vmax.f32 %v698, 0.0
  %v715 = vpack.c.bf16 %v699, %v699
  %v716 = vpack.c.bf16 %v700, %v700
  %v717 = vpack.c.bf16 %v701, %v701
  %v718 = vpack.c.bf16 %v702, %v702
  %v719 = vpack.c.bf16 %v703, %v703
  %v720 = vpack.c.bf16 %v704, %v704
  %v721 = vpack.c.bf16 %v705, %v705
  %v722 = vpack.c.bf16 %v706, %v706
  %v723 = vpack.c.bf16 %v707, %v707
  %v724 = vpack.c.bf16 %v708, %v708
  %v725 = vpack.c.bf16 %v709, %v709
  %v726 = vpack.c.bf16 %v710, %v710
  %v727 = vpack.c.bf16 %v711, %v711
  %v728 = vpack.c.bf16 %v712, %v712
  %v729 = vpack.c.bf16 %v713, %v713
  %v730 = vpack.c.bf16 %v714, %v714
  %v745 = vunpack.c.l.b16 %v715
  %v746 = vunpack.c.l.b16 %v716
  %v747 = vunpack.c.l.b16 %v717
  %v748 = vunpack.c.l.b16 %v718
  %v749 = vunpack.c.l.b16 %v719
  %v750 = vunpack.c.l.b16 %v720
  %v751 = vunpack.c.l.b16 %v721
  %v752 = vunpack.c.l.b16 %v722
  %v753 = vunpack.c.l.b16 %v723
  %v754 = vunpack.c.l.b16 %v724
  %v755 = vunpack.c.l.b16 %v725
  %v756 = vunpack.c.l.b16 %v726
  %v757 = vunpack.c.l.b16 %v727
  %v758 = vunpack.c.l.b16 %v728
  %v759 = vpack.c.b16 %v746, %v745
  %v760 = vpack.c.b16 %v748, %v747
  %v761 = vpack.c.b16 %v750, %v749
  %v762 = vpack.c.b16 %v752, %v751
  %v763 = vpack.c.b16 %v754, %v753
  %v764 = vpack.c.b16 %v756, %v755
  %v765 = vpack.c.b16 %v758, %v757
  %v768 = vunpack.c.l.b16 %v729
  %v769 = vunpack.c.l.b16 %v730
  %v770 = vpack.c.b16 %v769, %v768
  %771 = vrot.lane.b32.xlu0 %v759, 64
  %v772 = vpop.permute.xlu0 %771
  %773 = vrot.lane.b32.xlu0 %v760, 64
  %v774 = vpop.permute.xlu0 %773
  %775 = vrot.lane.b32.xlu0 %v761, 64
  %v776 = vpop.permute.xlu0 %775
  %777 = vrot.lane.b32.xlu0 %v762, 64
  %v778 = vpop.permute.xlu0 %777
  %779 = vrot.lane.b32.xlu0 %v763, 64
  %v780 = vpop.permute.xlu0 %779
  %781 = vrot.lane.b32.xlu0 %v764, 64
  %v782 = vpop.permute.xlu0 %781
  %783 = vrot.lane.b32.xlu0 %v765, 64
  %v784 = vpop.permute.xlu0 %783
  %785 = vrot.lane.b32.xlu0 %v770, 64
  %v786 = vpop.permute.xlu0 %785
  %v788 = vsel %vm416, 0, %v772
  %v792 = vsel %vm416, %v759, %v774
  %v796 = vsel %vm416, %v760, %v776
  %v800 = vsel %vm416, %v761, %v778
  %v804 = vsel %vm416, %v762, %v780
  %v808 = vsel %vm416, %v763, %v782
  %v812 = vsel %vm416, %v764, %v784
  %v816 = vsel %vm416, %v765, %v786
  %v818 = vld [vmem:[%s7] sm:$0xf]
  %v819 = vld [vmem:[%s7 + $0x4] sm:$0xf]
  %v820 = vld [vmem:[%s7 + $0x8] sm:$0xf]
  %v821 = vld [vmem:[%s7 + $0xc] sm:$0xf]
  %v822 = vld [vmem:[%s7 + $0x10] sm:$0xf]
  %v823 = vld [vmem:[%s7 + $0x14] sm:$0xf]
  %v824 = vld [vmem:[%s7 + $0x18] sm:$0xf]
  %v825 = vld [vmem:[%s7 + $0x1c] sm:$0xf]
  %v826 = vld [vmem:[%s7 + $0x20] sm:$0xf]
  %v827 = vld [vmem:[%s7 + $0x24] sm:$0xf]
  %v828 = vld [vmem:[%s7 + $0x28] sm:$0xf]
  %v829 = vld [vmem:[%s7 + $0x2c] sm:$0xf]
  %v830 = vld [vmem:[%s7 + $0x30] sm:$0xf]
  %v831 = vld [vmem:[%s7 + $0x34] sm:$0xf]
  %v832 = vld [vmem:[%s7 + $0x38] sm:$0xf]
  %v833 = vld [vmem:[%s7 + $0x3c] sm:$0xf]
  %v834 = vld [vmem:[%s7 + $0x40] sm:$0xf]
  %v835 = vld [vmem:[%s7 + $0x44] sm:$0xf]
  %v836 = vld [vmem:[%s7 + $0x48] sm:$0xf]
  %v837 = vld [vmem:[%s7 + $0x4c] sm:$0xf]
  %v838 = vld [vmem:[%s7 + $0x50] sm:$0xf]
  %v839 = vld [vmem:[%s7 + $0x54] sm:$0xf]
  %v840 = vld [vmem:[%s7 + $0x58] sm:$0xf]
  %v841 = vld [vmem:[%s7 + $0x5c] sm:$0xf]
  %v866 = vunpack.c.l.b16 %v818
  %v867 = vunpack.c.l.b16 %v819
  %v868 = vunpack.c.l.b16 %v820
  %v869 = vunpack.c.l.b16 %v821
  %v870 = vunpack.c.l.b16 %v822
  %v871 = vunpack.c.l.b16 %v823
  %v872 = vunpack.c.l.b16 %v824
  %v873 = vunpack.c.l.b16 %v825
  %v874 = vunpack.c.l.b16 %v826
  %v875 = vunpack.c.l.b16 %v827
  %v876 = vunpack.c.l.b16 %v828
  %v877 = vunpack.c.l.b16 %v829
  %v878 = vunpack.c.l.b16 %v830
  %v879 = vunpack.c.l.b16 %v831
  %v880 = vunpack.c.l.b16 %v832
  %v881 = vunpack.c.l.b16 %v833
  %v882 = vunpack.c.l.b16 %v834
  %v883 = vunpack.c.l.b16 %v835
  %v884 = vunpack.c.l.b16 %v836
  %v885 = vunpack.c.l.b16 %v837
  %v886 = vunpack.c.l.b16 %v838
  %v887 = vunpack.c.l.b16 %v839
  %v888 = vunpack.c.l.b16 %v840
  %v889 = vunpack.c.l.b16 %v841
  %v890 = vpack.c.b16 %v867, %v866
  %v891 = vpack.c.b16 %v869, %v868
  %v892 = vpack.c.b16 %v871, %v870
  %v893 = vpack.c.b16 %v873, %v872
  %v894 = vpack.c.b16 %v875, %v874
  %v895 = vpack.c.b16 %v877, %v876
  %v896 = vpack.c.b16 %v879, %v878
  %v897 = vpack.c.b16 %v881, %v880
  %v898 = vpack.c.b16 %v883, %v882
  %v899 = vpack.c.b16 %v885, %v884
  %v900 = vpack.c.b16 %v887, %v886
  %v901 = vpack.c.b16 %v889, %v888
  %v914 = vsel %vm416, %v760, 0
  %v916 = vsel %vm416, %v761, 0
  %v918 = vsel %vm416, %v762, 0
  %v920 = vsel %vm416, %v763, 0
  %v922 = vsel %vm416, %v764, 0
  %v924 = vsel %vm416, %v765, 0
  %v927 = vsel %vm416, %v770, 0
  %929 = vmatpush.bf16.msra.mxu0 %v897
  %930 = vmatpush.bf16.msra.mxu0 %v896
  %931 = vmatpush.bf16.msra.mxu0 %v895
  %932 = vmatpush.bf16.msra.mxu0 %v894
  %933 = vmatpush.bf16.msra.mxu0 %v893
  %934 = vmatpush.bf16.msra.mxu0 %v892
  %935 = vmatpush.bf16.msra.mxu0 %v891
  %936 = vmatpush.bf16.msra.mxu0 %v890
  %937 = vmatmul.bf16.gmra.mxu0 %v788
  %v938 = vpop.f32.mrf.mxu0
  %v939 = vadd.f32 0.0, %v938
  %v940 = vpop.f32.mrf.mxu0
  %v941 = vadd.f32 0.0, %v940
  %942 = vmatmul.bf16.gmra.mxu0 %v792
  %v943 = vpop.f32.mrf.mxu0
  %v944 = vadd.f32 0.0, %v943
  %v945 = vpop.f32.mrf.mxu0
  %v946 = vadd.f32 0.0, %v945
  %947 = vmatmul.bf16.gmra.mxu0 %v796
  %v948 = vpop.f32.mrf.mxu0
  %v949 = vadd.f32 0.0, %v948
  %v950 = vpop.f32.mrf.mxu0
  %v951 = vadd.f32 0.0, %v950
  %952 = vmatmul.bf16.gmra.mxu0 %v800
  %v953 = vpop.f32.mrf.mxu0
  %v954 = vadd.f32 0.0, %v953
  %v955 = vpop.f32.mrf.mxu0
  %v956 = vadd.f32 0.0, %v955
  %957 = vmatmul.bf16.gmra.mxu0 %v804
  %v958 = vpop.f32.mrf.mxu0
  %v959 = vadd.f32 0.0, %v958
  %v960 = vpop.f32.mrf.mxu0
  %v961 = vadd.f32 0.0, %v960
  %962 = vmatmul.bf16.gmra.mxu0 %v808
  %v963 = vpop.f32.mrf.mxu0
  %v964 = vadd.f32 0.0, %v963
  %v965 = vpop.f32.mrf.mxu0
  %v966 = vadd.f32 0.0, %v965
  %967 = vmatmul.bf16.gmra.mxu0 %v812
  %v968 = vpop.f32.mrf.mxu0
  %v969 = vadd.f32 0.0, %v968
  %v970 = vpop.f32.mrf.mxu0
  %v971 = vadd.f32 0.0, %v970
  %972 = vmatmul.bf16.gmra.mxu0 %v816
  %v973 = vpop.f32.mrf.mxu0
  %v974 = vadd.f32 0.0, %v973
  %v975 = vpop.f32.mrf.mxu0
  %v976 = vadd.f32 0.0, %v975
  %977 = vdwg.mxu0
  %978 = vmatpush.bf16.msra.mxu0 0
  %979 = vmatpush.bf16.msra.mxu0 0
  %980 = vmatpush.bf16.msra.mxu0 0
  %981 = vmatpush.bf16.msra.mxu0 0
  %982 = vmatpush.bf16.msra.mxu0 %v901
  %983 = vmatpush.bf16.msra.mxu0 %v900
  %984 = vmatpush.bf16.msra.mxu0 %v899
  %985 = vmatpush.bf16.msra.mxu0 %v898
  %986 = vmatmul.bf16.gmra.mxu0 %v914
  %v987 = vpop.f32.mrf.mxu0
  %v988 = vadd.f32 %v939, %v987
  %v989 = vpop.f32.mrf.mxu0
  %v990 = vadd.f32 %v941, %v989
  %991 = vmatmul.bf16.gmra.mxu0 %v916
  %v992 = vpop.f32.mrf.mxu0
  %v993 = vadd.f32 %v944, %v992
  %v994 = vpop.f32.mrf.mxu0
  %v995 = vadd.f32 %v946, %v994
  %996 = vmatmul.bf16.gmra.mxu0 %v918
  %v997 = vpop.f32.mrf.mxu0
  %v998 = vadd.f32 %v949, %v997
  %v999 = vpop.f32.mrf.mxu0
  %v1000 = vadd.f32 %v951, %v999
  %1001 = vmatmul.bf16.gmra.mxu0 %v920
  %v1002 = vpop.f32.mrf.mxu0
  %v1003 = vadd.f32 %v954, %v1002
  %v1004 = vpop.f32.mrf.mxu0
  %v1005 = vadd.f32 %v956, %v1004
  %1006 = vmatmul.bf16.gmra.mxu0 %v922
  %v1007 = vpop.f32.mrf.mxu0
  %v1008 = vadd.f32 %v959, %v1007
  %v1009 = vpop.f32.mrf.mxu0
  %v1010 = vadd.f32 %v961, %v1009
  %1011 = vmatmul.bf16.gmra.mxu0 %v924
  %v1012 = vpop.f32.mrf.mxu0
  %v1013 = vadd.f32 %v964, %v1012
  %v1014 = vpop.f32.mrf.mxu0
  %v1015 = vadd.f32 %v966, %v1014
  %1016 = vmatmul.bf16.gmra.mxu0 %v927
  %v1017 = vpop.f32.mrf.mxu0
  %v1018 = vadd.f32 %v969, %v1017
  %v1019 = vpop.f32.mrf.mxu0
  %v1020 = vadd.f32 %v971, %v1019
  %1021 = vmatmul.bf16.gmra.mxu0 %v559
  %v1022 = vpop.f32.mrf.mxu0
  %v1023 = vadd.f32 %v974, %v1022
  %v1024 = vpop.f32.mrf.mxu0
  %v1025 = vadd.f32 %v976, %v1024
  %1026 = vdwg.mxu0
  %v1027 = vld [vmem:[%s8] sm:$0x1]
  %v1029 = vperm.slane %v1027, 0
  %v1031 = vmul.f32 %v988, %v1029
  %v1032 = vmul.f32 %v990, %v1029
  %v1033 = vmul.f32 %v993, %v1029
  %v1034 = vmul.f32 %v995, %v1029
  %v1035 = vmul.f32 %v998, %v1029
  %v1036 = vmul.f32 %v1000, %v1029
  %v1037 = vmul.f32 %v1003, %v1029
  %v1038 = vmul.f32 %v1005, %v1029
  %v1039 = vmul.f32 %v1008, %v1029
  %v1040 = vmul.f32 %v1010, %v1029
  %v1041 = vmul.f32 %v1013, %v1029
  %v1042 = vmul.f32 %v1015, %v1029
  %v1043 = vmul.f32 %v1018, %v1029
  %v1044 = vmul.f32 %v1020, %v1029
  %v1045 = vmul.f32 %v1023, %v1029
  %v1046 = vmul.f32 %v1025, %v1029
  %v1047 = vld [vmem:[%s9] sm:$0x1]
  %v1049 = vperm.slane %v1047, 0
  %v1051 = vadd.f32 %v1031, %v1049
  %v1052 = vadd.f32 %v1032, %v1049
  %v1053 = vadd.f32 %v1033, %v1049
  %v1054 = vadd.f32 %v1034, %v1049
  %v1055 = vadd.f32 %v1035, %v1049
  %v1056 = vadd.f32 %v1036, %v1049
  %v1057 = vadd.f32 %v1037, %v1049
  %v1058 = vadd.f32 %v1038, %v1049
  %v1059 = vadd.f32 %v1039, %v1049
  %v1060 = vadd.f32 %v1040, %v1049
  %v1061 = vadd.f32 %v1041, %v1049
  %v1062 = vadd.f32 %v1042, %v1049
  %v1063 = vadd.f32 %v1043, %v1049
  %v1064 = vadd.f32 %v1044, %v1049
  %v1065 = vadd.f32 %v1045, %v1049
  %v1066 = vadd.f32 %v1046, %v1049
  %v1067 = vmax.f32 %v1051, 0.0
  %v1068 = vmax.f32 %v1052, 0.0
  %v1069 = vmax.f32 %v1053, 0.0
  %v1070 = vmax.f32 %v1054, 0.0
  %v1071 = vmax.f32 %v1055, 0.0
  %v1072 = vmax.f32 %v1056, 0.0
  %v1073 = vmax.f32 %v1057, 0.0
  %v1074 = vmax.f32 %v1058, 0.0
  %v1075 = vmax.f32 %v1059, 0.0
  %v1076 = vmax.f32 %v1060, 0.0
  %v1077 = vmax.f32 %v1061, 0.0
  %v1078 = vmax.f32 %v1062, 0.0
  %v1079 = vmax.f32 %v1063, 0.0
  %v1080 = vmax.f32 %v1064, 0.0
  %v1081 = vmax.f32 %v1065, 0.0
  %v1082 = vmax.f32 %v1066, 0.0
  %v1083 = vpack.c.bf16 %v1067, %v1067
  %v1084 = vpack.c.bf16 %v1068, %v1068
  %v1085 = vpack.c.bf16 %v1069, %v1069
  %v1086 = vpack.c.bf16 %v1070, %v1070
  %v1087 = vpack.c.bf16 %v1071, %v1071
  %v1088 = vpack.c.bf16 %v1072, %v1072
  %v1089 = vpack.c.bf16 %v1073, %v1073
  %v1090 = vpack.c.bf16 %v1074, %v1074
  %v1091 = vpack.c.bf16 %v1075, %v1075
  %v1092 = vpack.c.bf16 %v1076, %v1076
  %v1093 = vpack.c.bf16 %v1077, %v1077
  %v1094 = vpack.c.bf16 %v1078, %v1078
  %v1095 = vpack.c.bf16 %v1079, %v1079
  %v1096 = vpack.c.bf16 %v1080, %v1080
  %v1097 = vpack.c.bf16 %v1081, %v1081
  %v1098 = vpack.c.bf16 %v1082, %v1082
  %v1113 = vunpack.c.l.b16 %v1083
  %v1114 = vunpack.c.l.b16 %v1084
  %v1115 = vunpack.c.l.b16 %v1085
  %v1116 = vunpack.c.l.b16 %v1086
  %v1117 = vunpack.c.l.b16 %v1087
  %v1118 = vunpack.c.l.b16 %v1088
  %v1119 = vunpack.c.l.b16 %v1089
  %v1120 = vunpack.c.l.b16 %v1090
  %v1121 = vunpack.c.l.b16 %v1091
  %v1122 = vunpack.c.l.b16 %v1092
  %v1123 = vunpack.c.l.b16 %v1093
  %v1124 = vunpack.c.l.b16 %v1094
  %v1125 = vunpack.c.l.b16 %v1095
  %v1126 = vunpack.c.l.b16 %v1096
  %v1127 = vpack.c.b16 %v1114, %v1113
  %v1128 = vpack.c.b16 %v1116, %v1115
  %v1129 = vpack.c.b16 %v1118, %v1117
  %v1130 = vpack.c.b16 %v1120, %v1119
  %v1131 = vpack.c.b16 %v1122, %v1121
  %v1132 = vpack.c.b16 %v1124, %v1123
  %v1133 = vpack.c.b16 %v1126, %v1125
  %v1136 = vunpack.c.l.b16 %v1097
  %v1137 = vunpack.c.l.b16 %v1098
  %v1138 = vpack.c.b16 %v1137, %v1136
  %1139 = vrot.lane.b32.xlu0 %v1127, 64
  %v1140 = vpop.permute.xlu0 %1139
  %1141 = vrot.lane.b32.xlu0 %v1128, 64
  %v1142 = vpop.permute.xlu0 %1141
  %1143 = vrot.lane.b32.xlu0 %v1129, 64
  %v1144 = vpop.permute.xlu0 %1143
  %1145 = vrot.lane.b32.xlu0 %v1130, 64
  %v1146 = vpop.permute.xlu0 %1145
  %1147 = vrot.lane.b32.xlu0 %v1131, 64
  %v1148 = vpop.permute.xlu0 %1147
  %1149 = vrot.lane.b32.xlu0 %v1132, 64
  %v1150 = vpop.permute.xlu0 %1149
  %1151 = vrot.lane.b32.xlu0 %v1133, 64
  %v1152 = vpop.permute.xlu0 %1151
  %1153 = vrot.lane.b32.xlu0 %v1138, 64
  %v1154 = vpop.permute.xlu0 %1153
  %v1156 = vsel %vm416, 0, %v1140
  %v1160 = vsel %vm416, %v1127, %v1142
  %v1164 = vsel %vm416, %v1128, %v1144
  %v1168 = vsel %vm416, %v1129, %v1146
  %v1172 = vsel %vm416, %v1130, %v1148
  %v1176 = vsel %vm416, %v1131, %v1150
  %v1180 = vsel %vm416, %v1132, %v1152
  %v1184 = vsel %vm416, %v1133, %v1154
  %v1186 = vld [vmem:[%s10] sm:$0xf]
  %v1187 = vld [vmem:[%s10 + $0x4] sm:$0xf]
  %v1188 = vld [vmem:[%s10 + $0x8] sm:$0xf]
  %v1189 = vld [vmem:[%s10 + $0xc] sm:$0xf]
  %v1190 = vld [vmem:[%s10 + $0x10] sm:$0xf]
  %v1191 = vld [vmem:[%s10 + $0x14] sm:$0xf]
  %v1192 = vld [vmem:[%s10 + $0x18] sm:$0xf]
  %v1193 = vld [vmem:[%s10 + $0x1c] sm:$0xf]
  %v1194 = vld [vmem:[%s10 + $0x20] sm:$0xf]
  %v1195 = vld [vmem:[%s10 + $0x24] sm:$0xf]
  %v1196 = vld [vmem:[%s10 + $0x28] sm:$0xf]
  %v1197 = vld [vmem:[%s10 + $0x2c] sm:$0xf]
  %v1198 = vld [vmem:[%s10 + $0x30] sm:$0xf]
  %v1199 = vld [vmem:[%s10 + $0x34] sm:$0xf]
  %v1200 = vld [vmem:[%s10 + $0x38] sm:$0xf]
  %v1201 = vld [vmem:[%s10 + $0x3c] sm:$0xf]
  %v1202 = vld [vmem:[%s10 + $0x40] sm:$0xf]
  %v1203 = vld [vmem:[%s10 + $0x44] sm:$0xf]
  %v1204 = vld [vmem:[%s10 + $0x48] sm:$0xf]
  %v1205 = vld [vmem:[%s10 + $0x4c] sm:$0xf]
  %v1206 = vld [vmem:[%s10 + $0x50] sm:$0xf]
  %v1207 = vld [vmem:[%s10 + $0x54] sm:$0xf]
  %v1208 = vld [vmem:[%s10 + $0x58] sm:$0xf]
  %v1209 = vld [vmem:[%s10 + $0x5c] sm:$0xf]
  %v1234 = vunpack.c.l.b16 %v1186
  %v1235 = vunpack.c.l.b16 %v1187
  %v1236 = vunpack.c.l.b16 %v1188
  %v1237 = vunpack.c.l.b16 %v1189
  %v1238 = vunpack.c.l.b16 %v1190
  %v1239 = vunpack.c.l.b16 %v1191
  %v1240 = vunpack.c.l.b16 %v1192
  %v1241 = vunpack.c.l.b16 %v1193
  %v1242 = vunpack.c.l.b16 %v1194
  %v1243 = vunpack.c.l.b16 %v1195
  %v1244 = vunpack.c.l.b16 %v1196
  %v1245 = vunpack.c.l.b16 %v1197
  %v1246 = vunpack.c.l.b16 %v1198
  %v1247 = vunpack.c.l.b16 %v1199
  %v1248 = vunpack.c.l.b16 %v1200
  %v1249 = vunpack.c.l.b16 %v1201
  %v1250 = vunpack.c.l.b16 %v1202
  %v1251 = vunpack.c.l.b16 %v1203
  %v1252 = vunpack.c.l.b16 %v1204
  %v1253 = vunpack.c.l.b16 %v1205
  %v1254 = vunpack.c.l.b16 %v1206
  %v1255 = vunpack.c.l.b16 %v1207
  %v1256 = vunpack.c.l.b16 %v1208
  %v1257 = vunpack.c.l.b16 %v1209
  %v1258 = vpack.c.b16 %v1235, %v1234
  %v1259 = vpack.c.b16 %v1237, %v1236
  %v1260 = vpack.c.b16 %v1239, %v1238
  %v1261 = vpack.c.b16 %v1241, %v1240
  %v1262 = vpack.c.b16 %v1243, %v1242
  %v1263 = vpack.c.b16 %v1245, %v1244
  %v1264 = vpack.c.b16 %v1247, %v1246
  %v1265 = vpack.c.b16 %v1249, %v1248
  %v1266 = vpack.c.b16 %v1251, %v1250
  %v1267 = vpack.c.b16 %v1253, %v1252
  %v1268 = vpack.c.b16 %v1255, %v1254
  %v1269 = vpack.c.b16 %v1257, %v1256
  %v1282 = vsel %vm416, %v1128, 0
  %v1284 = vsel %vm416, %v1129, 0
  %v1286 = vsel %vm416, %v1130, 0
  %v1288 = vsel %vm416, %v1131, 0
  %v1290 = vsel %vm416, %v1132, 0
  %v1292 = vsel %vm416, %v1133, 0
  %v1295 = vsel %vm416, %v1138, 0
  %1297 = vmatpush.bf16.msra.mxu0 %v1265
  %1298 = vmatpush.bf16.msra.mxu0 %v1264
  %1299 = vmatpush.bf16.msra.mxu0 %v1263
  %1300 = vmatpush.bf16.msra.mxu0 %v1262
  %1301 = vmatpush.bf16.msra.mxu0 %v1261
  %1302 = vmatpush.bf16.msra.mxu0 %v1260
  %1303 = vmatpush.bf16.msra.mxu0 %v1259
  %1304 = vmatpush.bf16.msra.mxu0 %v1258
  %1305 = vmatmul.bf16.gmra.mxu0 %v1156
  %v1306 = vpop.f32.mrf.mxu0
  %v1307 = vpop.f32.mrf.mxu0
  %1308 = vmatmul.bf16.gmra.mxu0 %v1160
  %v1309 = vpop.f32.mrf.mxu0
  %v1310 = vpop.f32.mrf.mxu0
  %1311 = vmatmul.bf16.gmra.mxu0 %v1164
  %v1312 = vpop.f32.mrf.mxu0
  %v1313 = vpop.f32.mrf.mxu0
  %1314 = vmatmul.bf16.gmra.mxu0 %v1168
  %v1315 = vpop.f32.mrf.mxu0
  %v1316 = vpop.f32.mrf.mxu0
  %1317 = vmatmul.bf16.gmra.mxu0 %v1172
  %v1318 = vpop.f32.mrf.mxu0
  %v1319 = vpop.f32.mrf.mxu0
  %1320 = vmatmul.bf16.gmra.mxu0 %v1176
  %v1321 = vpop.f32.mrf.mxu0
  %v1322 = vpop.f32.mrf.mxu0
  %1323 = vmatmul.bf16.gmra.mxu0 %v1180
  %v1324 = vpop.f32.mrf.mxu0
  %v1325 = vadd.f32 0.0, %v1324
  %v1326 = vpop.f32.mrf.mxu0
  %v1327 = vadd.f32 0.0, %v1326
  %1328 = vmatmul.bf16.gmra.mxu0 %v1184
  %v1329 = vpop.f32.mrf.mxu0
  %v1330 = vadd.f32 0.0, %v1329
  %v1331 = vpop.f32.mrf.mxu0
  %v1332 = vadd.f32 0.0, %v1331
  %1333 = vdwg.mxu0
  %1334 = vmatpush.bf16.msra.mxu0 0
  %1335 = vmatpush.bf16.msra.mxu0 0
  %1336 = vmatpush.bf16.msra.mxu0 0
  %1337 = vmatpush.bf16.msra.mxu0 0
  %1338 = vmatpush.bf16.msra.mxu0 %v1269
  %1339 = vmatpush.bf16.msra.mxu0 %v1268
  %1340 = vmatpush.bf16.msra.mxu0 %v1267
  %1341 = vmatpush.bf16.msra.mxu0 %v1266
  %1342 = vmatmul.bf16.gmra.mxu0 %v1282
  %v1343 = vpop.f32.mrf.mxu0
  %v1344 = vpop.f32.mrf.mxu0
  %1345 = vmatmul.bf16.gmra.mxu0 %v1284
  %v1346 = vpop.f32.mrf.mxu0
  %v1347 = vpop.f32.mrf.mxu0
  %1348 = vmatmul.bf16.gmra.mxu0 %v1286
  %v1349 = vpop.f32.mrf.mxu0
  %v1350 = vpop.f32.mrf.mxu0
  %1351 = vmatmul.bf16.gmra.mxu0 %v1288
  %v1352 = vpop.f32.mrf.mxu0
  %v1353 = vpop.f32.mrf.mxu0
  %1354 = vmatmul.bf16.gmra.mxu0 %v1290
  %v1355 = vpop.f32.mrf.mxu0
  %v1356 = vpop.f32.mrf.mxu0
  %1357 = vmatmul.bf16.gmra.mxu0 %v1292
  %v1358 = vpop.f32.mrf.mxu0
  %v1359 = vpop.f32.mrf.mxu0
  %1360 = vmatmul.bf16.gmra.mxu0 %v1295
  %v1361 = vpop.f32.mrf.mxu0
  %v1362 = vadd.f32 %v1325, %v1361
  %v1363 = vpop.f32.mrf.mxu0
  %v1364 = vadd.f32 %v1327, %v1363
  %1365 = vmatmul.bf16.gmra.mxu0 %v559
  %v1366 = vpop.f32.mrf.mxu0
  %v1367 = vadd.f32 %v1330, %v1366
  %v1368 = vpop.f32.mrf.mxu0
  %v1369 = vadd.f32 %v1332, %v1368
  %1370 = vdwg.mxu0
  %v1371 = vld [vmem:[%s11] sm:$0x1]
  %v1373 = vperm.slane %v1371, 0
  %v1375 = vmul.f32 %v1362, %v1373
  %v1376 = vmul.f32 %v1364, %v1373
  %v1377 = vmul.f32 %v1367, %v1373
  %v1378 = vmul.f32 %v1369, %v1373
  %v1379 = vld [vmem:[%s12] sm:$0x1]
  %v1381 = vperm.slane %v1379, 0
  %v1383 = vadd.f32 %v1375, %v1381
  %v1384 = vadd.f32 %v1376, %v1381
  %v1385 = vadd.f32 %v1377, %v1381
  %v1386 = vadd.f32 %v1378, %v1381
  %v1387 = vmax.f32 %v1383, 0.0
  %v1388 = vmax.f32 %v1384, 0.0
  %v1389 = vmax.f32 %v1385, 0.0
  %v1390 = vmax.f32 %v1386, 0.0
  %v1391 = vpack.c.bf16 %v1387, %v1387
  %v1392 = vpack.c.bf16 %v1388, %v1388
  %v1393 = vpack.c.bf16 %v1389, %v1389
  %v1394 = vpack.c.bf16 %v1390, %v1390
  %v1397 = vunpack.c.l.b16 %v1391
  %v1398 = vunpack.c.l.b16 %v1392
  %v1399 = vpack.c.b16 %v1398, %v1397
  %v1402 = vunpack.c.l.b16 %v1393
  %v1403 = vunpack.c.l.b16 %v1394
  %v1404 = vpack.c.b16 %v1403, %v1402
  %1405 = vrot.lane.b32.xlu0 %v1404, 64
  %v1406 = vpop.permute.xlu0 %1405
  %v1409 = vsel %vm416, %v1399, %v1406
  %v1411 = vld [vmem:[%s13] sm:$0xf]
  %v1412 = vld [vmem:[%s13 + $0x4] sm:$0xf]
  %v1413 = vld [vmem:[%s13 + $0x8] sm:$0xf]
  %v1414 = vld [vmem:[%s13 + $0xc] sm:$0xf]
  %v1415 = vld [vmem:[%s13 + $0x10] sm:$0xf]
  %v1416 = vld [vmem:[%s13 + $0x14] sm:$0xf]
  %v1417 = vld [vmem:[%s13 + $0x18] sm:$0xf]
  %v1418 = vld [vmem:[%s13 + $0x1c] sm:$0xf]
  %v1419 = vld [vmem:[%s13 + $0x20] sm:$0xf]
  %v1420 = vld [vmem:[%s13 + $0x24] sm:$0xf]
  %v1421 = vld [vmem:[%s13 + $0x28] sm:$0xf]
  %v1422 = vld [vmem:[%s13 + $0x2c] sm:$0xf]
  %v1423 = vld [vmem:[%s13 + $0x30] sm:$0xf]
  %v1424 = vld [vmem:[%s13 + $0x34] sm:$0xf]
  %v1425 = vld [vmem:[%s13 + $0x38] sm:$0xf]
  %v1426 = vld [vmem:[%s13 + $0x3c] sm:$0xf]
  %v1427 = vld [vmem:[%s14] sm:$0x1]
  %v1429 = vperm.slane %v1427, 0
  %v1447 = vunpack.c.l.b16 %v1411
  %v1448 = vunpack.c.l.b16 %v1412
  %v1449 = vunpack.c.l.b16 %v1413
  %v1450 = vunpack.c.l.b16 %v1414
  %v1451 = vunpack.c.l.b16 %v1415
  %v1452 = vunpack.c.l.b16 %v1416
  %v1453 = vunpack.c.l.b16 %v1417
  %v1454 = vunpack.c.l.b16 %v1418
  %v1455 = vunpack.c.l.b16 %v1419
  %v1456 = vunpack.c.l.b16 %v1420
  %v1457 = vunpack.c.l.b16 %v1421
  %v1458 = vunpack.c.l.b16 %v1422
  %v1459 = vunpack.c.l.b16 %v1423
  %v1460 = vunpack.c.l.b16 %v1424
  %v1461 = vunpack.c.l.b16 %v1425
  %v1462 = vunpack.c.l.b16 %v1426
  %v1463 = vpack.c.b16 %v1448, %v1447
  %v1464 = vpack.c.b16 %v1450, %v1449
  %v1465 = vpack.c.b16 %v1452, %v1451
  %v1466 = vpack.c.b16 %v1454, %v1453
  %v1467 = vpack.c.b16 %v1456, %v1455
  %v1468 = vpack.c.b16 %v1458, %v1457
  %v1469 = vpack.c.b16 %v1460, %v1459
  %v1470 = vpack.c.b16 %v1462, %v1461
  %1479 = vmatpush.bf16.msra.mxu0 %v1470
  %1480 = vmatpush.bf16.msra.mxu0 %v1469
  %1481 = vmatpush.bf16.msra.mxu0 %v1468
  %1482 = vmatpush.bf16.msra.mxu0 %v1467
  %1483 = vmatpush.bf16.msra.mxu0 %v1466
  %1484 = vmatpush.bf16.msra.mxu0 %v1465
  %1485 = vmatpush.bf16.msra.mxu0 %v1464
  %1486 = vmatpush.bf16.msra.mxu0 %v1463
  %1487 = vmatmul.bf16.gmra.mxu0 %v1409
  %v1488 = vpop.f32.mrf.mxu0
  %v1489 = vadd.f32 %v1429, %v1488
  %v1490 = vpop.f32.mrf.mxu0
  %v1491 = vadd.f32 %v1429, %v1490
  %1492 = vdwg.mxu0
  %vm1493 = vcmask 48128
  %1494 = vst.msk [vmem:[%s15] sm:$0xff] %vm1493, %v1489
  %1495 = vst.msk [vmem:[%s15 + $0x8] sm:$0xff] %vm1493, %v1491
  // Predicated region
  $region62: #{tpu_custom_call.1} parent=0 // pred_check
    _
  $region63: #{tpu_custom_call.1} parent=0 // pred_check_branch
    %1497 = sbr.rel (0) target = $region65
  $region64: #{tpu_custom_call.1} parent=0 // pred_region
    _
  $region65: #{tpu_custom_call.1} parent=0 // pred_fallthru
    _
  // Predicated region
  $region66: #{tpu_custom_call.1} parent=0 // pred_check
    _
  $region67: #{tpu_custom_call.1} parent=0 // pred_check_branch
    %1499 = sbr.rel (0) target = $region69
  $region68: #{tpu_custom_call.1} parent=0 // pred_region
    _
  $region69: #{tpu_custom_call.1} parent=0 // pred_fallthru
    _

</llo_original>
